<compile_context>
chip_gen: v6e
topology: v6e:2x2x1
jax: 0.10.0
libtpu: 0.0.40
codegen_flags: <defaults>
</compile_context>

<pallas_src>
import jax
import jax.numpy as jnp
from jax.experimental import pallas as pl
from jax.experimental.pallas import tpu as pltpu

BN_EPS = 1e-5
LANE = 128
FP_PAD = 192          # drug fingerprint 167 zero-padded to 192


def _round_up(x, m):
    return (x + m - 1) // m * m


# ----------------------------------------------------------------------------
# Kernel
# ----------------------------------------------------------------------------
def build_kernel(batch, vec_off, w_off):
    B = batch

    def kernel(dd_ref, c_ref, vec_ref, dgw_ref, w_ref, out_ref):
        def vec(name, width=LANE):
            o = vec_off[name]
            return vec_ref[:, o:o + width]                     # (1, width)

        def wmat(name, rows):
            r = w_off[name]
            return w_ref[r:r + rows, :]                        # (rows, 128)

        def mm(x, w):
            return jnp.dot(x, w, preferred_element_type=jnp.float32)

        def bn(x, g, b):
            # PyTorch BatchNorm1d training mode (batch mean, biased variance),
            # folded into one centered scale+shift.  Zero-padded lanes stay 0
            # because the padded gamma/beta are exactly 0.
            m = jnp.mean(x, axis=0, keepdims=True)
            xc = x - m
            v = jnp.mean(xc * xc, axis=0, keepdims=True)
            return xc * (g * jax.lax.rsqrt(v + BN_EPS)) + b

        # ---- drug encoder (shared weights): d1,d2 stacked as [2B, 192] -----
        dd = dd_ref[...]
        h = jnp.maximum(mm(dd, wmat("dfp_w", FP_PAD)) + vec("dfp_b"), 0.0)   # (2B,128)
        g32 = vec("dbn_g")
        b32 = vec("dbn_b")
        # BN statistics stay per-drug-call (rows 0:B vs B:2B).  B % 8 == 0 is
        # asserted in the wrapper, so this split/concat is tile-aligned (free).
        h = jnp.concatenate([bn(h[:B], g32, b32), bn(h[B:], g32, b32)], axis=0)
        h = jnp.maximum(mm(h, wmat("dfc1_w", LANE)) + vec("dfc1_b"), 0.0)    # (2B,128)
        d_enc = mm(h, wmat("dfc2_w", LANE)) + vec("dfc2_b")                  # (2B,128)

        # ---- cell encoder ---------------------------------------------------
        gw = dgw_ref[...]
        gc = jnp.maximum(mm(c_ref[...].astype(gw.dtype), gw) + vec("dg_b", 256), 0.0)
        gc = bn(gc, vec("cbn_g", 256), vec("cbn_b", 256))                    # (B,256)
        gc = jnp.maximum(mm(gc, wmat("cfc1_w", 256)) + vec("cfc1_b"), 0.0)   # (B,128)
        c_enc = mm(gc, wmat("cfc2_w", LANE)) + vec("cfc2_b")                 # (B,128)

        # ---- fc_1 = FC2(192, 64) on the *virtual* concat [d1e | d2e | ce] ---
        # BN applied per 64-wide segment (each kept lane-dense at 128 with
        # zero pads); the (B,192)@(192,96) is three accumulated 128x128
        # matmuls with zero-padded rows/cols.
        d1n = bn(d_enc[:B], vec("f1bn_g0"), vec("f1bn_b0"))
        d2n = bn(d_enc[B:], vec("f1bn_g1"), vec("f1bn_b1"))
        cn = bn(c_enc, vec("f1bn_g2"), vec("f1bn_b2"))
        h1 = (mm(d1n, wmat("f1fc1_w0", LANE))
              + mm(d2n, wmat("f1fc1_w1", LANE))
              + mm(cn, wmat("f1fc1_w2", LANE))
              + vec("f1fc1_b"))
        h1 = jnp.maximum(h1, 0.0)                                            # (B,128)
        x = mm(h1, wmat("f1fc2_w", LANE)) + vec("f1fc2_b")                   # (B,128)

        # ---- fc_2: 64 -> 1, stored lane-dense in a (B, 128) slab ------------
        # (real result in lane 0; padded weight/bias columns are zero).
        out_ref[...] = mm(x, wmat("f2_w", LANE)) + vec("f2_b")

    return kernel


# ----------------------------------------------------------------------------
# Parameter packing (model-load time, NOT in the jitted per-call path)
# ----------------------------------------------------------------------------
def pack_params(params, num_genes, gene_dtype=jnp.float32):
    """Packs 24 parameter tensors into 3 lane-dense slabs.

    All padding is with exact zeros (jnp.pad default) -- this is a correctness
    invariant: padded gamma/beta/bias columns and padded weight rows/cols must
    be 0 so padded lanes carry exact zeros through the whole network.
    """
    (dfp_w, dfp_b, dbn_g, dbn_b, dfc1_w, dfc1_b, dfc2_w, dfc2_b,
     dg_w, dg_b, cbn_g, cbn_b, cfc1_w, cfc1_b, cfc2_w, cfc2_b,
     f1bn_g, f1bn_b, f1fc1_w, f1fc1_b, f1fc2_w, f1fc2_b,
     f2_w, f2_b) = params

    # --- every 1-D param (bias / gamma / beta) in one lane-aligned row ------
    vec_entries = [
        ("dfp_b", dfp_b), ("dbn_g", dbn_g), ("dbn_b", dbn_b),
        ("dfc1_b", dfc1_b), ("dfc2_b", dfc2_b),
        ("dg_b", dg_b), ("cbn_g", cbn_g), ("cbn_b", cbn_b),
        ("cfc1_b", cfc1_b), ("cfc2_b", cfc2_b),
        ("f1bn_g0", f1bn_g[:, 0:64]), ("f1bn_g1", f1bn_g[:, 64:128]),
        ("f1bn_g2", f1bn_g[:, 128:192]),
        ("f1bn_b0", f1bn_b[:, 0:64]), ("f1bn_b1", f1bn_b[:, 64:128]),
        ("f1bn_b2", f1bn_b[:, 128:192]),
        ("f1fc1_b", f1fc1_b), ("f1fc2_b", f1fc2_b), ("f2_b", f2_b),
    ]
    vec_off = {}
    pieces = []
    off = 0
    for name, v in vec_entries:
        v = jnp.asarray(v, jnp.float32).reshape(1, -1)
        width = v.shape[1]
        slot = _round_up(width, LANE)
        vec_off[name] = off
        pieces.append(jnp.pad(v, ((0, 0), (0, slot - width))))   # zero pad
        off += slot
    vec_slab = jnp.concatenate(pieces, axis=1)            # (1, ~2.8k) ~11 KiB

    # --- all 2-D weights except dense_gene in one (rows, 128) slab ----------
    def pad2(m, rows_pad, cols_pad=LANE):
        m = jnp.asarray(m, jnp.float32)
        r, c = m.shape
        return jnp.pad(m, ((0, rows_pad - r), (0, cols_pad - c)))  # zero pad

    w_entries = [
        ("dfp_w", pad2(dfp_w, FP_PAD)),            # (167,32)  -> (192,128)
        ("dfc1_w", pad2(dfc1_w, LANE)),            # (32,16)   -> (128,128)
        ("dfc2_w", pad2(dfc2_w, LANE)),            # (16,64)   -> (128,128)
        ("cfc1_w", pad2(cfc1_w, 256)),             # (256,128) -> (256,128)
        ("cfc2_w", pad2(cfc2_w, LANE)),            # (128,64)  -> (128,128)
        ("f1fc1_w0", pad2(f1fc1_w[0:64, :], LANE)),     # (64,96) -> (128,128)
        ("f1fc1_w1", pad2(f1fc1_w[64:128, :], LANE)),   # (64,96) -> (128,128)
        ("f1fc1_w2", pad2(f1fc1_w[128:192, :], LANE)),  # (64,96) -> (128,128)
        ("f1fc2_w", pad2(f1fc2_w, LANE)),          # (96,64)   -> (128,128)
        ("f2_w", pad2(f2_w, LANE)),                # (64,1)    -> (128,128)
    ]
    w_off = {}
    blocks = []
    row = 0
    for name, blk in w_entries:
        w_off[name] = row
        blocks.append(blk)
        row += blk.shape[0]
    w_slab = jnp.concatenate(blocks, axis=0)       # (1472, 128) ~736 KiB

    # --- dense_gene weight stays its own (G_pad, 256) slab -------------------
    # gene_dtype=jnp.bfloat16 halves the dominant HBM->VMEM DMA for large
    # num_genes (biggest win on v5e); demo keeps f32 for exact reference match.
    g_pad = _round_up(max(num_genes, 1), LANE)
    dgw_pad = jnp.pad(jnp.asarray(dg_w, jnp.float32),
                      ((0, g_pad - num_genes), (0, 0))).astype(gene_dtype)

    return vec_slab, vec_off, dgw_pad, w_slab, w_off, g_pad


# ----------------------------------------------------------------------------
# Forward factory: jitted closure over the static packing layout
# ----------------------------------------------------------------------------
def make_comb_forward(batch, vec_off, w_off):
    assert batch % 8 == 0, "batch must be a multiple of 8 (f32 sublane tile)"
    kernel = build_kernel(batch, vec_off, w_off)

    @jax.jit
    def forward(d1, d2, c, vec_slab, dgw_pad, w_slab):
        num_fp = d1.shape[1]
        num_genes = c.shape[1]
        g_pad = dgw_pad.shape[0]
        assert num_fp <= FP_PAD and num_genes <= g_pad

        # Stack d1/d2 so the shared drug encoder runs as one matmul chain, and
        # zero-pad the ragged contraction dims once here.
        dd = jnp.pad(jnp.concatenate([d1, d2], axis=0).astype(jnp.float32),
                     ((0, 0), (0, FP_PAD - num_fp)))
        c_pad = jnp.pad(c.astype(jnp.float32),
                        ((0, 0), (0, g_pad - num_genes)))

        operands = (dd, c_pad, vec_slab, dgw_pad, w_slab)
        bytes_accessed = (sum(int(x.size) * x.dtype.itemsize for x in operands)
                          + batch * LANE * 4)
        macs = (2 * batch * (FP_PAD * LANE + LANE * LANE + LANE * LANE)   # drug
                + batch * (g_pad * 256 + 256 * LANE + LANE * LANE)        # cell
                + batch * (5 * LANE * LANE))                              # fc_1 / fc_2
        cost = pl.CostEstimate(flops=2 * macs, transcendentals=1024,
                               bytes_accessed=bytes_accessed)
        vmem_limit = int(min(64 << 20, max(32 << 20, 2 * bytes_accessed)))

        vmem = pl.BlockSpec(memory_space=pltpu.MemorySpace.VMEM)
        out = pl.pallas_call(
            kernel,
            out_shape=jax.ShapeDtypeStruct((batch, LANE), jnp.float32),
            in_specs=[vmem] * 5,
            out_specs=vmem,
            cost_estimate=cost,
            compiler_params=pltpu.CompilerParams(vmem_limit_bytes=vmem_limit),
        )(*operands)
        return out[:, :1]

    return forward


# ----------------------------------------------------------------------------
# Deterministic synthetic parameters (Linear weights stored (in, out))
# ----------------------------------------------------------------------------
def init_params(key, num_genes):
    keys = iter(jax.random.split(key, 32))

    def w(shape, scale=0.05):
        return jax.random.normal(next(keys), shape, jnp.float32) * scale

    def b(n):
        return jax.random.normal(next(keys), (1, n), jnp.float32) * 0.01

    def gamma(n):
        return 1.0 + jax.random.normal(next(keys), (1, n), jnp.float32) * 0.01

    params = [
        # DrugEncoder: dense_fp 167->32, FC2(32,64): bn(32), 32->16, 16->64
        w((167, 32)), b(32),
        gamma(32), b(32), w((32, 16)), b(16), w((16, 64)), b(64),
        # CellEncoder: dense_gene num_genes->256, FC2(256,64): bn(256), 256->128, 128->64
        w((num_genes, 256)), b(256),
        gamma(256), b(256), w((256, 128)), b(128), w((128, 64)), b(64),
        # fc_1 = FC2(192,64): bn(192), 192->96, 96->64
        gamma(192), b(192), w((192, 96)), b(96), w((96, 64)), b(64),
        # fc_2: 64->1
        w((64, 1)), b(1),
    ]
    return params


# ----------------------------------------------------------------------------
# Pure-JAX reference of the same math (correctness check)
# ----------------------------------------------------------------------------
def ref_forward(d1, d2, c, params):
    (dfp_w, dfp_b, dbn_g, dbn_b, dfc1_w, dfc1_b, dfc2_w, dfc2_b,
     dg_w, dg_b, cbn_g, cbn_b, cfc1_w, cfc1_b, cfc2_w, cfc2_b,
     f1bn_g, f1bn_b, f1fc1_w, f1fc1_b, f1fc2_w, f1fc2_b,
     f2_w, f2_b) = params

    def bn(x, g, bb):
        m = x.mean(0, keepdims=True)
        v = ((x - m) ** 2).mean(0, keepdims=True)
        return (x - m) / jnp.sqrt(v + BN_EPS) * g + bb

    def fc2(x, g, bb, w1, b1, w2, b2):
        x = bn(x, g, bb)
        x = jnp.maximum(x @ w1 + b1, 0.0)
        return x @ w2 + b2

    d1e = fc2(jnp.maximum(d1 @ dfp_w + dfp_b, 0.0),
              dbn_g, dbn_b, dfc1_w, dfc1_b, dfc2_w, dfc2_b)
    d2e = fc2(jnp.maximum(d2 @ dfp_w + dfp_b, 0.0),
              dbn_g, dbn_b, dfc1_w, dfc1_b, dfc2_w, dfc2_b)
    ce = fc2(jnp.maximum(c @ dg_w + dg_b, 0.0),
             cbn_g, cbn_b, cfc1_w, cfc1_b, cfc2_w, cfc2_b)
    x = fc2(jnp.concatenate([d1e, d2e, ce], axis=1),
            f1bn_g, f1bn_b, f1fc1_w, f1fc1_b, f1fc2_w, f1fc2_b)
    return x @ f2_w + f2_b


if __name__ == "__main__":
    batch = 64             # multiple of 8; fills sublanes/MXU rows far better than 8
    num_genes = 256        # Comb default num_genes=0 is unusable; pick a small value.
    num_drug_fp = 167

    key = jax.random.PRNGKey(0)
    k_d1, k_d2, k_c, k_p = jax.random.split(key, 4)

    d1 = jax.random.normal(k_d1, (batch, num_drug_fp), jnp.float32)
    d2 = jax.random.normal(k_d2, (batch, num_drug_fp), jnp.float32)
    c_ = jax.random.normal(k_c, (batch, num_genes), jnp.float32)

    params = init_params(k_p, num_genes)

    # Pack ONCE at model-load time (hoisted out of the jitted per-call path).
    vec_slab, vec_off, dgw_pad, w_slab, w_off, g_pad = pack_params(params, num_genes)
    vec_slab, dgw_pad, w_slab = jax.device_put((vec_slab, dgw_pad, w_slab))

    comb_forward = make_comb_forward(batch, vec_off, w_off)

    out = comb_forward(d1, d2, c_, vec_slab, dgw_pad, w_slab)
    out = jax.block_until_ready(out)

    ref = ref_forward(d1, d2, c_, params)
    assert out.shape == (batch, 1)
    assert jnp.allclose(out, ref, atol=2e-4, rtol=2e-4), (out, ref)

    print("KERNEL_OK")
</pallas_src>

<mosaic_0001>
module attributes {stable_mosaic.version = 11 : i64} {
  func.func @kernel(%arg0: memref<128x192xf32, #tpu.memory_space<vmem>>, %arg1: memref<64x256xf32, #tpu.memory_space<vmem>>, %arg2: memref<1x2816xf32, #tpu.memory_space<vmem>>, %arg3: memref<256x256xf32, #tpu.memory_space<vmem>>, %arg4: memref<1472x128xf32, #tpu.memory_space<vmem>>, %arg5: memref<64x128xf32, #tpu.memory_space<vmem>>) attributes {dimension_semantics = [], scalar_prefetch = 0 : i64, scratch_operands = 0 : i64, tpu.core_type = #tpu.core_type<tc>} {
    %c0 = arith.constant 0 : index
    %c0_0 = arith.constant 0 : index
    %0 = vector.load %arg0[%c0, %c0_0] : memref<128x192xf32, #tpu.memory_space<vmem>>, vector<128x192xf32>
    %c0_1 = arith.constant 0 : index
    %c0_2 = arith.constant 0 : index
    %1 = vector.load %arg4[%c0_1, %c0_2] : memref<1472x128xf32, #tpu.memory_space<vmem>>, vector<192x128xf32>
    %cst = arith.constant dense<0.000000e+00> : vector<128x128xf32>
    %2 = tpu.matmul %0, %1, %cst {dimension_numbers = #tpu.dot_dimension_numbers<[1], [0], [0], [1], [0, 0, 1, 1], [], []>} : vector<128x192xf32>, vector<192x128xf32>, vector<128x128xf32> -> vector<128x128xf32>
    %c0_3 = arith.constant 0 : index
    %c0_4 = arith.constant 0 : index
    %3 = vector.load %arg2[%c0_3, %c0_4] : memref<1x2816xf32, #tpu.memory_space<vmem>>, vector<1x128xf32>
    %4 = vector.broadcast %3 : vector<1x128xf32> to vector<128x128xf32>
    %5 = arith.addf %2, %4 : vector<128x128xf32>
    %cst_5 = arith.constant 0.000000e+00 : f32
    %6 = vector.broadcast %cst_5 : f32 to vector<128x128xf32>
    %7 = arith.maximumf %5, %6 : vector<128x128xf32>
    %c0_6 = arith.constant 0 : index
    %c128 = arith.constant 128 : index
    %8 = vector.load %arg2[%c0_6, %c128] : memref<1x2816xf32, #tpu.memory_space<vmem>>, vector<1x128xf32>
    %c0_7 = arith.constant 0 : index
    %c256 = arith.constant 256 : index
    %9 = vector.load %arg2[%c0_7, %c256] : memref<1x2816xf32, #tpu.memory_space<vmem>>, vector<1x128xf32>
    %10 = vector.extract_strided_slice %7 {offsets = [0, 0], sizes = [64, 128], strides = [1, 1]} : vector<128x128xf32> to vector<64x128xf32>
    %cst_8 = arith.constant dense<0.000000e+00> : vector<128xf32>
    %11 = vector.multi_reduction <add>, %10, %cst_8 [0] : vector<64x128xf32> to vector<128xf32>
    %12 = vector.shape_cast %11 : vector<128xf32> to vector<1x128xf32>
    %cst_9 = arith.constant 6.400000e+01 : f32
    %13 = vector.broadcast %cst_9 : f32 to vector<1x128xf32>
    %14 = arith.divf %12, %13 : vector<1x128xf32>
    %15 = vector.broadcast %14 : vector<1x128xf32> to vector<64x128xf32>
    %16 = arith.subf %10, %15 : vector<64x128xf32>
    %17 = arith.mulf %16, %16 : vector<64x128xf32>
    %cst_10 = arith.constant dense<0.000000e+00> : vector<128xf32>
    %18 = vector.multi_reduction <add>, %17, %cst_10 [0] : vector<64x128xf32> to vector<128xf32>
    %19 = vector.shape_cast %18 : vector<128xf32> to vector<1x128xf32>
    %cst_11 = arith.constant 6.400000e+01 : f32
    %20 = vector.broadcast %cst_11 : f32 to vector<1x128xf32>
    %21 = arith.divf %19, %20 : vector<1x128xf32>
    %cst_12 = arith.constant 9.99999974E-6 : f32
    %22 = vector.broadcast %cst_12 : f32 to vector<1x128xf32>
    %23 = arith.addf %21, %22 : vector<1x128xf32>
    %24 = math.rsqrt %23 : vector<1x128xf32>
    %25 = arith.mulf %8, %24 : vector<1x128xf32>
    %26 = vector.broadcast %25 : vector<1x128xf32> to vector<64x128xf32>
    %27 = arith.mulf %16, %26 : vector<64x128xf32>
    %28 = vector.broadcast %9 : vector<1x128xf32> to vector<64x128xf32>
    %29 = arith.addf %27, %28 : vector<64x128xf32>
    %30 = vector.extract_strided_slice %7 {offsets = [64, 0], sizes = [64, 128], strides = [1, 1]} : vector<128x128xf32> to vector<64x128xf32>
    %cst_13 = arith.constant dense<0.000000e+00> : vector<128xf32>
    %31 = vector.multi_reduction <add>, %30, %cst_13 [0] : vector<64x128xf32> to vector<128xf32>
    %32 = vector.shape_cast %31 : vector<128xf32> to vector<1x128xf32>
    %cst_14 = arith.constant 6.400000e+01 : f32
    %33 = vector.broadcast %cst_14 : f32 to vector<1x128xf32>
    %34 = arith.divf %32, %33 : vector<1x128xf32>
    %35 = vector.broadcast %34 : vector<1x128xf32> to vector<64x128xf32>
    %36 = arith.subf %30, %35 : vector<64x128xf32>
    %37 = arith.mulf %36, %36 : vector<64x128xf32>
    %cst_15 = arith.constant dense<0.000000e+00> : vector<128xf32>
    %38 = vector.multi_reduction <add>, %37, %cst_15 [0] : vector<64x128xf32> to vector<128xf32>
    %39 = vector.shape_cast %38 : vector<128xf32> to vector<1x128xf32>
    %cst_16 = arith.constant 6.400000e+01 : f32
    %40 = vector.broadcast %cst_16 : f32 to vector<1x128xf32>
    %41 = arith.divf %39, %40 : vector<1x128xf32>
    %cst_17 = arith.constant 9.99999974E-6 : f32
    %42 = vector.broadcast %cst_17 : f32 to vector<1x128xf32>
    %43 = arith.addf %41, %42 : vector<1x128xf32>
    %44 = math.rsqrt %43 : vector<1x128xf32>
    %45 = arith.mulf %8, %44 : vector<1x128xf32>
    %46 = vector.broadcast %45 : vector<1x128xf32> to vector<64x128xf32>
    %47 = arith.mulf %36, %46 : vector<64x128xf32>
    %48 = vector.broadcast %9 : vector<1x128xf32> to vector<64x128xf32>
    %49 = arith.addf %47, %48 : vector<64x128xf32>
    %50 = tpu.concatenate %29, %49 in 0 : vector<64x128xf32>, vector<64x128xf32> -> vector<128x128xf32>
    %c192 = arith.constant 192 : index
    %c0_18 = arith.constant 0 : index
    %51 = vector.load %arg4[%c192, %c0_18] : memref<1472x128xf32, #tpu.memory_space<vmem>>, vector<128x128xf32>
    %cst_19 = arith.constant dense<0.000000e+00> : vector<128x128xf32>
    %52 = tpu.matmul %50, %51, %cst_19 {dimension_numbers = #tpu.dot_dimension_numbers<[1], [0], [0], [1], [0, 0, 1, 1], [], []>} : vector<128x128xf32>, vector<128x128xf32>, vector<128x128xf32> -> vector<128x128xf32>
    %c0_20 = arith.constant 0 : index
    %c384 = arith.constant 384 : index
    %53 = vector.load %arg2[%c0_20, %c384] : memref<1x2816xf32, #tpu.memory_space<vmem>>, vector<1x128xf32>
    %54 = vector.broadcast %53 : vector<1x128xf32> to vector<128x128xf32>
    %55 = arith.addf %52, %54 : vector<128x128xf32>
    %cst_21 = arith.constant 0.000000e+00 : f32
    %56 = vector.broadcast %cst_21 : f32 to vector<128x128xf32>
    %57 = arith.maximumf %55, %56 : vector<128x128xf32>
    %c320 = arith.constant 320 : index
    %c0_22 = arith.constant 0 : index
    %58 = vector.load %arg4[%c320, %c0_22] : memref<1472x128xf32, #tpu.memory_space<vmem>>, vector<128x128xf32>
    %cst_23 = arith.constant dense<0.000000e+00> : vector<128x128xf32>
    %59 = tpu.matmul %57, %58, %cst_23 {dimension_numbers = #tpu.dot_dimension_numbers<[1], [0], [0], [1], [0, 0, 1, 1], [], []>} : vector<128x128xf32>, vector<128x128xf32>, vector<128x128xf32> -> vector<128x128xf32>
    %c0_24 = arith.constant 0 : index
    %c512 = arith.constant 512 : index
    %60 = vector.load %arg2[%c0_24, %c512] : memref<1x2816xf32, #tpu.memory_space<vmem>>, vector<1x128xf32>
    %61 = vector.broadcast %60 : vector<1x128xf32> to vector<128x128xf32>
    %62 = arith.addf %59, %61 : vector<128x128xf32>
    %c0_25 = arith.constant 0 : index
    %c0_26 = arith.constant 0 : index
    %63 = vector.load %arg3[%c0_25, %c0_26] : memref<256x256xf32, #tpu.memory_space<vmem>>, vector<256x256xf32>
    %c0_27 = arith.constant 0 : index
    %c0_28 = arith.constant 0 : index
    %64 = vector.load %arg1[%c0_27, %c0_28] : memref<64x256xf32, #tpu.memory_space<vmem>>, vector<64x256xf32>
    %cst_29 = arith.constant dense<0.000000e+00> : vector<64x256xf32>
    %65 = tpu.matmul %64, %63, %cst_29 {dimension_numbers = #tpu.dot_dimension_numbers<[1], [0], [0], [1], [0, 0, 1, 1], [], []>} : vector<64x256xf32>, vector<256x256xf32>, vector<64x256xf32> -> vector<64x256xf32>
    %c0_30 = arith.constant 0 : index
    %c640 = arith.constant 640 : index
    %66 = vector.load %arg2[%c0_30, %c640] : memref<1x2816xf32, #tpu.memory_space<vmem>>, vector<1x256xf32>
    %67 = vector.broadcast %66 : vector<1x256xf32> to vector<64x256xf32>
    %68 = arith.addf %65, %67 : vector<64x256xf32>
    %cst_31 = arith.constant 0.000000e+00 : f32
    %69 = vector.broadcast %cst_31 : f32 to vector<64x256xf32>
    %70 = arith.maximumf %68, %69 : vector<64x256xf32>
    %c0_32 = arith.constant 0 : index
    %c896 = arith.constant 896 : index
    %71 = vector.load %arg2[%c0_32, %c896] : memref<1x2816xf32, #tpu.memory_space<vmem>>, vector<1x256xf32>
    %c0_33 = arith.constant 0 : index
    %c1152 = arith.constant 1152 : index
    %72 = vector.load %arg2[%c0_33, %c1152] : memref<1x2816xf32, #tpu.memory_space<vmem>>, vector<1x256xf32>
    %cst_34 = arith.constant dense<0.000000e+00> : vector<256xf32>
    %73 = vector.multi_reduction <add>, %70, %cst_34 [0] : vector<64x256xf32> to vector<256xf32>
    %74 = vector.shape_cast %73 : vector<256xf32> to vector<1x256xf32>
    %cst_35 = arith.constant 6.400000e+01 : f32
    %75 = vector.broadcast %cst_35 : f32 to vector<1x256xf32>
    %76 = arith.divf %74, %75 : vector<1x256xf32>
    %77 = vector.broadcast %76 : vector<1x256xf32> to vector<64x256xf32>
    %78 = arith.subf %70, %77 : vector<64x256xf32>
    %79 = arith.mulf %78, %78 : vector<64x256xf32>
    %cst_36 = arith.constant dense<0.000000e+00> : vector<256xf32>
    %80 = vector.multi_reduction <add>, %79, %cst_36 [0] : vector<64x256xf32> to vector<256xf32>
    %81 = vector.shape_cast %80 : vector<256xf32> to vector<1x256xf32>
    %cst_37 = arith.constant 6.400000e+01 : f32
    %82 = vector.broadcast %cst_37 : f32 to vector<1x256xf32>
    %83 = arith.divf %81, %82 : vector<1x256xf32>
    %cst_38 = arith.constant 9.99999974E-6 : f32
    %84 = vector.broadcast %cst_38 : f32 to vector<1x256xf32>
    %85 = arith.addf %83, %84 : vector<1x256xf32>
    %86 = math.rsqrt %85 : vector<1x256xf32>
    %87 = arith.mulf %71, %86 : vector<1x256xf32>
    %88 = vector.broadcast %87 : vector<1x256xf32> to vector<64x256xf32>
    %89 = arith.mulf %78, %88 : vector<64x256xf32>
    %90 = vector.broadcast %72 : vector<1x256xf32> to vector<64x256xf32>
    %91 = arith.addf %89, %90 : vector<64x256xf32>
    %c448 = arith.constant 448 : index
    %c0_39 = arith.constant 0 : index
    %92 = vector.load %arg4[%c448, %c0_39] : memref<1472x128xf32, #tpu.memory_space<vmem>>, vector<256x128xf32>
    %cst_40 = arith.constant dense<0.000000e+00> : vector<64x128xf32>
    %93 = tpu.matmul %91, %92, %cst_40 {dimension_numbers = #tpu.dot_dimension_numbers<[1], [0], [0], [1], [0, 0, 1, 1], [], []>} : vector<64x256xf32>, vector<256x128xf32>, vector<64x128xf32> -> vector<64x128xf32>
    %c0_41 = arith.constant 0 : index
    %c1408 = arith.constant 1408 : index
    %94 = vector.load %arg2[%c0_41, %c1408] : memref<1x2816xf32, #tpu.memory_space<vmem>>, vector<1x128xf32>
    %95 = vector.broadcast %94 : vector<1x128xf32> to vector<64x128xf32>
    %96 = arith.addf %93, %95 : vector<64x128xf32>
    %cst_42 = arith.constant 0.000000e+00 : f32
    %97 = vector.broadcast %cst_42 : f32 to vector<64x128xf32>
    %98 = arith.maximumf %96, %97 : vector<64x128xf32>
    %c704 = arith.constant 704 : index
    %c0_43 = arith.constant 0 : index
    %99 = vector.load %arg4[%c704, %c0_43] : memref<1472x128xf32, #tpu.memory_space<vmem>>, vector<128x128xf32>
    %cst_44 = arith.constant dense<0.000000e+00> : vector<64x128xf32>
    %100 = tpu.matmul %98, %99, %cst_44 {dimension_numbers = #tpu.dot_dimension_numbers<[1], [0], [0], [1], [0, 0, 1, 1], [], []>} : vector<64x128xf32>, vector<128x128xf32>, vector<64x128xf32> -> vector<64x128xf32>
    %c0_45 = arith.constant 0 : index
    %c1536 = arith.constant 1536 : index
    %101 = vector.load %arg2[%c0_45, %c1536] : memref<1x2816xf32, #tpu.memory_space<vmem>>, vector<1x128xf32>
    %102 = vector.broadcast %101 : vector<1x128xf32> to vector<64x128xf32>
    %103 = arith.addf %100, %102 : vector<64x128xf32>
    %104 = vector.extract_strided_slice %62 {offsets = [0, 0], sizes = [64, 128], strides = [1, 1]} : vector<128x128xf32> to vector<64x128xf32>
    %c0_46 = arith.constant 0 : index
    %c1664 = arith.constant 1664 : index
    %105 = vector.load %arg2[%c0_46, %c1664] : memref<1x2816xf32, #tpu.memory_space<vmem>>, vector<1x128xf32>
    %c0_47 = arith.constant 0 : index
    %c2048 = arith.constant 2048 : index
    %106 = vector.load %arg2[%c0_47, %c2048] : memref<1x2816xf32, #tpu.memory_space<vmem>>, vector<1x128xf32>
    %cst_48 = arith.constant dense<0.000000e+00> : vector<128xf32>
    %107 = vector.multi_reduction <add>, %104, %cst_48 [0] : vector<64x128xf32> to vector<128xf32>
    %108 = vector.shape_cast %107 : vector<128xf32> to vector<1x128xf32>
    %cst_49 = arith.constant 6.400000e+01 : f32
    %109 = vector.broadcast %cst_49 : f32 to vector<1x128xf32>
    %110 = arith.divf %108, %109 : vector<1x128xf32>
    %111 = vector.broadcast %110 : vector<1x128xf32> to vector<64x128xf32>
    %112 = arith.subf %104, %111 : vector<64x128xf32>
    %113 = arith.mulf %112, %112 : vector<64x128xf32>
    %cst_50 = arith.constant dense<0.000000e+00> : vector<128xf32>
    %114 = vector.multi_reduction <add>, %113, %cst_50 [0] : vector<64x128xf32> to vector<128xf32>
    %115 = vector.shape_cast %114 : vector<128xf32> to vector<1x128xf32>
    %cst_51 = arith.constant 6.400000e+01 : f32
    %116 = vector.broadcast %cst_51 : f32 to vector<1x128xf32>
    %117 = arith.divf %115, %116 : vector<1x128xf32>
    %cst_52 = arith.constant 9.99999974E-6 : f32
    %118 = vector.broadcast %cst_52 : f32 to vector<1x128xf32>
    %119 = arith.addf %117, %118 : vector<1x128xf32>
    %120 = math.rsqrt %119 : vector<1x128xf32>
    %121 = arith.mulf %105, %120 : vector<1x128xf32>
    %122 = vector.broadcast %121 : vector<1x128xf32> to vector<64x128xf32>
    %123 = arith.mulf %112, %122 : vector<64x128xf32>
    %124 = vector.broadcast %106 : vector<1x128xf32> to vector<64x128xf32>
    %125 = arith.addf %123, %124 : vector<64x128xf32>
    %126 = vector.extract_strided_slice %62 {offsets = [64, 0], sizes = [64, 128], strides = [1, 1]} : vector<128x128xf32> to vector<64x128xf32>
    %c0_53 = arith.constant 0 : index
    %c1792 = arith.constant 1792 : index
    %127 = vector.load %arg2[%c0_53, %c1792] : memref<1x2816xf32, #tpu.memory_space<vmem>>, vector<1x128xf32>
    %c0_54 = arith.constant 0 : index
    %c2176 = arith.constant 2176 : index
    %128 = vector.load %arg2[%c0_54, %c2176] : memref<1x2816xf32, #tpu.memory_space<vmem>>, vector<1x128xf32>
    %cst_55 = arith.constant dense<0.000000e+00> : vector<128xf32>
    %129 = vector.multi_reduction <add>, %126, %cst_55 [0] : vector<64x128xf32> to vector<128xf32>
    %130 = vector.shape_cast %129 : vector<128xf32> to vector<1x128xf32>
    %cst_56 = arith.constant 6.400000e+01 : f32
    %131 = vector.broadcast %cst_56 : f32 to vector<1x128xf32>
    %132 = arith.divf %130, %131 : vector<1x128xf32>
    %133 = vector.broadcast %132 : vector<1x128xf32> to vector<64x128xf32>
    %134 = arith.subf %126, %133 : vector<64x128xf32>
    %135 = arith.mulf %134, %134 : vector<64x128xf32>
    %cst_57 = arith.constant dense<0.000000e+00> : vector<128xf32>
    %136 = vector.multi_reduction <add>, %135, %cst_57 [0] : vector<64x128xf32> to vector<128xf32>
    %137 = vector.shape_cast %136 : vector<128xf32> to vector<1x128xf32>
    %cst_58 = arith.constant 6.400000e+01 : f32
    %138 = vector.broadcast %cst_58 : f32 to vector<1x128xf32>
    %139 = arith.divf %137, %138 : vector<1x128xf32>
    %cst_59 = arith.constant 9.99999974E-6 : f32
    %140 = vector.broadcast %cst_59 : f32 to vector<1x128xf32>
    %141 = arith.addf %139, %140 : vector<1x128xf32>
    %142 = math.rsqrt %141 : vector<1x128xf32>
    %143 = arith.mulf %127, %142 : vector<1x128xf32>
    %144 = vector.broadcast %143 : vector<1x128xf32> to vector<64x128xf32>
    %145 = arith.mulf %134, %144 : vector<64x128xf32>
    %146 = vector.broadcast %128 : vector<1x128xf32> to vector<64x128xf32>
    %147 = arith.addf %145, %146 : vector<64x128xf32>
    %c0_60 = arith.constant 0 : index
    %c1920 = arith.constant 1920 : index
    %148 = vector.load %arg2[%c0_60, %c1920] : memref<1x2816xf32, #tpu.memory_space<vmem>>, vector<1x128xf32>
    %c0_61 = arith.constant 0 : index
    %c2304 = arith.constant 2304 : index
    %149 = vector.load %arg2[%c0_61, %c2304] : memref<1x2816xf32, #tpu.memory_space<vmem>>, vector<1x128xf32>
    %cst_62 = arith.constant dense<0.000000e+00> : vector<128xf32>
    %150 = vector.multi_reduction <add>, %103, %cst_62 [0] : vector<64x128xf32> to vector<128xf32>
    %151 = vector.shape_cast %150 : vector<128xf32> to vector<1x128xf32>
    %cst_63 = arith.constant 6.400000e+01 : f32
    %152 = vector.broadcast %cst_63 : f32 to vector<1x128xf32>
    %153 = arith.divf %151, %152 : vector<1x128xf32>
    %154 = vector.broadcast %153 : vector<1x128xf32> to vector<64x128xf32>
    %155 = arith.subf %103, %154 : vector<64x128xf32>
    %156 = arith.mulf %155, %155 : vector<64x128xf32>
    %cst_64 = arith.constant dense<0.000000e+00> : vector<128xf32>
    %157 = vector.multi_reduction <add>, %156, %cst_64 [0] : vector<64x128xf32> to vector<128xf32>
    %158 = vector.shape_cast %157 : vector<128xf32> to vector<1x128xf32>
    %cst_65 = arith.constant 6.400000e+01 : f32
    %159 = vector.broadcast %cst_65 : f32 to vector<1x128xf32>
    %160 = arith.divf %158, %159 : vector<1x128xf32>
    %cst_66 = arith.constant 9.99999974E-6 : f32
    %161 = vector.broadcast %cst_66 : f32 to vector<1x128xf32>
    %162 = arith.addf %160, %161 : vector<1x128xf32>
    %163 = math.rsqrt %162 : vector<1x128xf32>
    %164 = arith.mulf %148, %163 : vector<1x128xf32>
    %165 = vector.broadcast %164 : vector<1x128xf32> to vector<64x128xf32>
    %166 = arith.mulf %155, %165 : vector<64x128xf32>
    %167 = vector.broadcast %149 : vector<1x128xf32> to vector<64x128xf32>
    %168 = arith.addf %166, %167 : vector<64x128xf32>
    %c832 = arith.constant 832 : index
    %c0_67 = arith.constant 0 : index
    %169 = vector.load %arg4[%c832, %c0_67] : memref<1472x128xf32, #tpu.memory_space<vmem>>, vector<128x128xf32>
    %cst_68 = arith.constant dense<0.000000e+00> : vector<64x128xf32>
    %170 = tpu.matmul %125, %169, %cst_68 {dimension_numbers = #tpu.dot_dimension_numbers<[1], [0], [0], [1], [0, 0, 1, 1], [], []>} : vector<64x128xf32>, vector<128x128xf32>, vector<64x128xf32> -> vector<64x128xf32>
    %c960 = arith.constant 960 : index
    %c0_69 = arith.constant 0 : index
    %171 = vector.load %arg4[%c960, %c0_69] : memref<1472x128xf32, #tpu.memory_space<vmem>>, vector<128x128xf32>
    %cst_70 = arith.constant dense<0.000000e+00> : vector<64x128xf32>
    %172 = tpu.matmul %147, %171, %cst_70 {dimension_numbers = #tpu.dot_dimension_numbers<[1], [0], [0], [1], [0, 0, 1, 1], [], []>} : vector<64x128xf32>, vector<128x128xf32>, vector<64x128xf32> -> vector<64x128xf32>
    %173 = arith.addf %170, %172 : vector<64x128xf32>
    %c1088 = arith.constant 1088 : index
    %c0_71 = arith.constant 0 : index
    %174 = vector.load %arg4[%c1088, %c0_71] : memref<1472x128xf32, #tpu.memory_space<vmem>>, vector<128x128xf32>
    %cst_72 = arith.constant dense<0.000000e+00> : vector<64x128xf32>
    %175 = tpu.matmul %168, %174, %cst_72 {dimension_numbers = #tpu.dot_dimension_numbers<[1], [0], [0], [1], [0, 0, 1, 1], [], []>} : vector<64x128xf32>, vector<128x128xf32>, vector<64x128xf32> -> vector<64x128xf32>
    %176 = arith.addf %173, %175 : vector<64x128xf32>
    %c0_73 = arith.constant 0 : index
    %c2432 = arith.constant 2432 : index
    %177 = vector.load %arg2[%c0_73, %c2432] : memref<1x2816xf32, #tpu.memory_space<vmem>>, vector<1x128xf32>
    %178 = vector.broadcast %177 : vector<1x128xf32> to vector<64x128xf32>
    %179 = arith.addf %176, %178 : vector<64x128xf32>
    %cst_74 = arith.constant 0.000000e+00 : f32
    %180 = vector.broadcast %cst_74 : f32 to vector<64x128xf32>
    %181 = arith.maximumf %179, %180 : vector<64x128xf32>
    %c1216 = arith.constant 1216 : index
    %c0_75 = arith.constant 0 : index
    %182 = vector.load %arg4[%c1216, %c0_75] : memref<1472x128xf32, #tpu.memory_space<vmem>>, vector<128x128xf32>
    %cst_76 = arith.constant dense<0.000000e+00> : vector<64x128xf32>
    %183 = tpu.matmul %181, %182, %cst_76 {dimension_numbers = #tpu.dot_dimension_numbers<[1], [0], [0], [1], [0, 0, 1, 1], [], []>} : vector<64x128xf32>, vector<128x128xf32>, vector<64x128xf32> -> vector<64x128xf32>
    %c0_77 = arith.constant 0 : index
    %c2560 = arith.constant 2560 : index
    %184 = vector.load %arg2[%c0_77, %c2560] : memref<1x2816xf32, #tpu.memory_space<vmem>>, vector<1x128xf32>
    %185 = vector.broadcast %184 : vector<1x128xf32> to vector<64x128xf32>
    %186 = arith.addf %183, %185 : vector<64x128xf32>
    %c1344 = arith.constant 1344 : index
    %c0_78 = arith.constant 0 : index
    %187 = vector.load %arg4[%c1344, %c0_78] : memref<1472x128xf32, #tpu.memory_space<vmem>>, vector<128x128xf32>
    %cst_79 = arith.constant dense<0.000000e+00> : vector<64x128xf32>
    %188 = tpu.matmul %186, %187, %cst_79 {dimension_numbers = #tpu.dot_dimension_numbers<[1], [0], [0], [1], [0, 0, 1, 1], [], []>} : vector<64x128xf32>, vector<128x128xf32>, vector<64x128xf32> -> vector<64x128xf32>
    %c0_80 = arith.constant 0 : index
    %c2688 = arith.constant 2688 : index
    %189 = vector.load %arg2[%c0_80, %c2688] : memref<1x2816xf32, #tpu.memory_space<vmem>>, vector<1x128xf32>
    %190 = vector.broadcast %189 : vector<1x128xf32> to vector<64x128xf32>
    %191 = arith.addf %188, %190 : vector<64x128xf32>
    %c0_81 = arith.constant 0 : index
    %c0_82 = arith.constant 0 : index
    %192 = vector.load %arg5[%c0_81, %c0_82] : memref<64x128xf32, #tpu.memory_space<vmem>>, vector<64x128xf32>
    tpu.vector_store %arg5[%c0_81, %c0_82], %191 {strides = array<i32>} : memref<64x128xf32, #tpu.memory_space<vmem>>, vector<64x128xf32>,
    return
  }
}

</mosaic_0001>

<llo_original>
// kernel: forward.1
$region0: #{forward.1}
  #allocation0 [shape = 'u32[]', space=smem, size = 0x4, offset = 0x4, fixed_abs, tag = 'smem constant byte address 0x4 - core index']
  #allocation1 [shape = 'u32[144,128]{1,0:T(1,128)}', space=vmem, size = 0x12000, scoped, tag = 'internal scratch']
  %s0 = inlined_call_operand.vmem [shape: f32[128,192], index: 0, kind: input, shape index: {}]
  %s1 = inlined_call_operand.hbm [shape: f32[64,256], index: 1, kind: input, shape index: {}]
  %s2 = inlined_call_operand.hbm [shape: f32[1,2816], index: 2, kind: input, shape index: {}]
  %s3 = inlined_call_operand.vmem [shape: f32[256,256], index: 3, kind: input, shape index: {}]
  %s4 = inlined_call_operand.hbm [shape: f32[1472,128], index: 4, kind: input, shape index: {}]
  %s5 = inlined_call_operand.vmem [shape: f32[64,128], index: 5, kind: output, shape index: {}]
  %s6 = sld [smem:[#allocation0]]
  $region42: #{forward.1} parent=0
    _
  %s8 = ssub.s32 1, %s6
  %s9 = scalar_select 0, %s8, %s6
  $region1: #{forward.1} parent=0
    #allocation2 [shape = 'u8[65536]{0}', space=vmem, size = 0x10000, scoped, tag = 'input window, operand 1, single buffered']
    #allocation3 [shape = 's32[1]{0}', space=sflag, size = 0x4, scoped, tag = 'scoped memory for forward.1']
    #allocation4 [shape = 'u8[11264]{0}', space=vmem, size = 0x2c00, scoped, tag = 'input window, operand 2, single buffered']
    #allocation5 [shape = 's32[1]{0}', space=sflag, size = 0x4, scoped, tag = 'scoped memory for forward.1']
    #allocation6 [shape = 'u8[753664]{0}', space=vmem, size = 0xb8000, scoped, tag = 'input window, operand 4, single buffered']
    %10 = vsyncpa [#allocation3], 0
    %11 = vsyncpa [#allocation5], 0
    // Predicated region
    $region2: #{forward.1} parent=1 // pred_check
      _
    $region3: #{forward.1} parent=1 // pred_check_branch
      %13 = sbr.rel (0) target = $region5
    $region4: #{forward.1} parent=1 // pred_region
      _
    $region5: #{forward.1} parent=1 // pred_fallthru
      _
    // Predicated region
    $region6: #{forward.1} parent=1 // pred_check
      _
    $region7: #{forward.1} parent=1 // pred_check_branch
      %15 = sbr.rel (0) target = $region9
    $region8: #{forward.1} parent=1 // pred_region
      %s17 = ssub.s32 2048, 2048
      %18 = vsyncadd [#allocation3], %s17
      %s19 = sshll.u32 [#allocation2], 4
      %s20 = int_to_ptr.vmem [resolvable:$true] %s19
      %25 = dma.hbm_to_vmem [thread:$0]  %s1, 2048, %s20, [#allocation3], 256, 256, 16
    $region9: #{forward.1} parent=1 // pred_fallthru
      _
    // Predicated region
    $region10: #{forward.1} parent=1 // pred_check
      _
    $region11: #{forward.1} parent=1 // pred_check_branch
      %27 = sbr.rel (0) target = $region13
    $region12: #{forward.1} parent=1 // pred_region
      %s29 = ssub.s32 352, 352
      %30 = vsyncadd [#allocation5], %s29
      %s32 = sshll.u32 [#allocation4], 4
      %s33 = int_to_ptr.vmem [resolvable:$true] %s32
      %35 = dma.hbm_to_vmem [thread:$0]  %s2, 352, %s33, [#allocation5]
    $region13: #{forward.1} parent=1 // pred_fallthru
      _
    // Predicated region
    $region14: #{forward.1} parent=1 // pred_check
      _
    $region15: #{forward.1} parent=1 // pred_check_branch
      %37 = sbr.rel (0) target = $region17
    $region16: #{forward.1} parent=1 // pred_region
      _
    $region17: #{forward.1} parent=1 // pred_fallthru
      _
    // Predicated region
    $region18: #{forward.1} parent=1 // pred_check
      _
    $region19: #{forward.1} parent=1 // pred_check_branch
      %39 = sbr.rel (0) target = $region21
    $region20: #{forward.1} parent=1 // pred_region
      %s41 = ssub.s32 23552, 23552
      %42 = vsyncadd [#allocation5], %s41
      %s43 = sshll.u32 [#allocation6], 4
      %s44 = int_to_ptr.vmem [resolvable:$true] %s43
      %49 = dma.hbm_to_vmem [thread:$0]  %s4, 23552, %s44, [#allocation5], 128, 128, 8
    $region21: #{forward.1} parent=1 // pred_fallthru
      _
    // Predicated region
    $region22: #{forward.1} parent=1 // pred_check
      _
    $region23: #{forward.1} parent=1 // pred_check_branch
      %51 = sbr.rel (0) target = $region25
    $region24: #{forward.1} parent=1 // pred_region
      %52 = dma.done [#allocation3], 2048
    $region25: #{forward.1} parent=1 // pred_fallthru
      _
    // Predicated region
    $region26: #{forward.1} parent=1 // pred_check
      _
    $region27: #{forward.1} parent=1 // pred_check_branch
      %54 = sbr.rel (0) target = $region29
    $region28: #{forward.1} parent=1 // pred_region
      %55 = dma.done [#allocation5], 352
    $region29: #{forward.1} parent=1 // pred_fallthru
      _
    // Predicated region
    $region30: #{forward.1} parent=1 // pred_check
      _
    $region31: #{forward.1} parent=1 // pred_check_branch
      %57 = sbr.rel (0) target = $region33
    $region32: #{forward.1} parent=1 // pred_region
      %58 = dma.done [#allocation5], 23552
    $region33: #{forward.1} parent=1 // pred_fallthru
      _
    %v59 = vld [vmem:[%s0] sm:$0xff]
    %v60 = vld [vmem:[%s0 + $0x8] sm:$0xff]
    %v61 = vld [vmem:[%s0 + $0x10] sm:$0xff]
    %v62 = vld [vmem:[%s0 + $0x18] sm:$0xff]
    %v63 = vld [vmem:[%s0 + $0x20] sm:$0xff]
    %v64 = vld [vmem:[%s0 + $0x28] sm:$0xff]
    %v65 = vld [vmem:[%s0 + $0x30] sm:$0xff]
    %v66 = vld [vmem:[%s0 + $0x38] sm:$0xff]
    %v67 = vld [vmem:[%s0 + $0x40] sm:$0xff]
    %v68 = vld [vmem:[%s0 + $0x48] sm:$0xff]
    %v69 = vld [vmem:[%s0 + $0x50] sm:$0xff]
    %v70 = vld [vmem:[%s0 + $0x58] sm:$0xff]
    %v71 = vld [vmem:[%s0 + $0x60] sm:$0xff]
    %v72 = vld [vmem:[%s0 + $0x68] sm:$0xff]
    %v73 = vld [vmem:[%s0 + $0x70] sm:$0xff]
    %v74 = vld [vmem:[%s0 + $0x78] sm:$0xff]
    %v75 = vld [vmem:[%s0 + $0x80] sm:$0xff]
    %v76 = vld [vmem:[%s0 + $0x88] sm:$0xff]
    %v77 = vld [vmem:[%s0 + $0x90] sm:$0xff]
    %v78 = vld [vmem:[%s0 + $0x98] sm:$0xff]
    %v79 = vld [vmem:[%s0 + $0xa0] sm:$0xff]
    %v80 = vld [vmem:[%s0 + $0xa8] sm:$0xff]
    %v81 = vld [vmem:[%s0 + $0xb0] sm:$0xff]
    %v82 = vld [vmem:[%s0 + $0xb8] sm:$0xff]
    %v83 = vld [vmem:[%s0 + $0xc0] sm:$0xff]
    %v84 = vld [vmem:[%s0 + $0xc8] sm:$0xff]
    %v85 = vld [vmem:[%s0 + $0xd0] sm:$0xff]
    %v86 = vld [vmem:[%s0 + $0xd8] sm:$0xff]
    %v87 = vld [vmem:[%s0 + $0xe0] sm:$0xff]
    %v88 = vld [vmem:[%s0 + $0xe8] sm:$0xff]
    %v89 = vld [vmem:[%s0 + $0xf0] sm:$0xff]
    %v90 = vld [vmem:[%s0 + $0xf8] sm:$0xff]
    %v91 = vld [vmem:[#allocation6] sm:$0xff]
    %v92 = vld [vmem:[#allocation6 + $0x8] sm:$0xff]
    %v93 = vld [vmem:[#allocation6 + $0x10] sm:$0xff]
    %v94 = vld [vmem:[#allocation6 + $0x18] sm:$0xff]
    %v95 = vld [vmem:[#allocation6 + $0x20] sm:$0xff]
    %v96 = vld [vmem:[#allocation6 + $0x28] sm:$0xff]
    %v97 = vld [vmem:[#allocation6 + $0x30] sm:$0xff]
    %v98 = vld [vmem:[#allocation6 + $0x38] sm:$0xff]
    %v99 = vld [vmem:[#allocation6 + $0x40] sm:$0xff]
    %v100 = vld [vmem:[#allocation6 + $0x48] sm:$0xff]
    %v101 = vld [vmem:[#allocation6 + $0x50] sm:$0xff]
    %v102 = vld [vmem:[#allocation6 + $0x58] sm:$0xff]
    %v103 = vld [vmem:[#allocation6 + $0x60] sm:$0xff]
    %v104 = vld [vmem:[#allocation6 + $0x68] sm:$0xff]
    %v105 = vld [vmem:[#allocation6 + $0x70] sm:$0xff]
    %v106 = vld [vmem:[#allocation6 + $0x78] sm:$0xff]
    %v107 = vld [vmem:[#allocation6 + $0x80] sm:$0xff]
    %v108 = vld [vmem:[#allocation6 + $0x88] sm:$0xff]
    %v109 = vld [vmem:[#allocation6 + $0x90] sm:$0xff]
    %v110 = vld [vmem:[#allocation6 + $0x98] sm:$0xff]
    %v111 = vld [vmem:[#allocation6 + $0xa0] sm:$0xff]
    %v112 = vld [vmem:[#allocation6 + $0xa8] sm:$0xff]
    %v113 = vld [vmem:[#allocation6 + $0xb0] sm:$0xff]
    %v114 = vld [vmem:[#allocation6 + $0xb8] sm:$0xff]
    %v115 = vld [vmem:[#allocation4] sm:$0x1]
    %v117 = vlaneseq
    %v118 = vshrl.u32 %v117, 7
    %v119 = vsub.s32 0, %v118
    %v120 = vrot.slane %v115, %v119
    %vm122 = vcmask 523264
    %v124 = vsel %vm122, %v60, 0
    %v127 = vsel %vm122, %v62, 0
    %v130 = vsel %vm122, %v64, 0
    %v133 = vsel %vm122, %v66, 0
    %v136 = vsel %vm122, %v68, 0
    %v139 = vsel %vm122, %v70, 0
    %v142 = vsel %vm122, %v72, 0
    %v145 = vsel %vm122, %v74, 0
    %v148 = vsel %vm122, %v76, 0
    %v151 = vsel %vm122, %v78, 0
    %v154 = vsel %vm122, %v80, 0
    %v157 = vsel %vm122, %v82, 0
    %v160 = vsel %vm122, %v84, 0
    %v163 = vsel %vm122, %v86, 0
    %v166 = vsel %vm122, %v88, 0
    %v169 = vsel %vm122, %v90, 0
    %171 = vmatprep.subr.mxu0 0.0
    %172 = vmatpush1.msra.mxu0 %v106
    %173 = vmatprep.subr.mxu0 0.0
    %174 = vmatpush1.msra.mxu0 %v105
    %175 = vmatprep.subr.mxu0 0.0
    %176 = vmatpush1.msra.mxu0 %v104
    %177 = vmatprep.subr.mxu0 0.0
    %178 = vmatpush1.msra.mxu0 %v103
    %179 = vmatprep.subr.mxu0 0.0
    %180 = vmatpush1.msra.mxu0 %v102
    %181 = vmatprep.subr.mxu0 0.0
    %182 = vmatpush1.msra.mxu0 %v101
    %183 = vmatprep.subr.mxu0 0.0
    %184 = vmatpush1.msra.mxu0 %v100
    %185 = vmatprep.subr.mxu0 0.0
    %186 = vmatpush1.msra.mxu0 %v99
    %187 = vmatprep.subr.mxu0 0.0
    %188 = vmatpush1.msra.mxu0 %v98
    %189 = vmatprep.subr.mxu0 0.0
    %190 = vmatpush1.msra.mxu0 %v97
    %191 = vmatprep.subr.mxu0 0.0
    %192 = vmatpush1.msra.mxu0 %v96
    %193 = vmatprep.subr.mxu0 0.0
    %194 = vmatpush1.msra.mxu0 %v95
    %195 = vmatprep.subr.mxu0 0.0
    %196 = vmatpush1.msra.mxu0 %v94
    %197 = vmatprep.subr.mxu0 0.0
    %198 = vmatpush1.msra.mxu0 %v93
    %199 = vmatprep.subr.mxu0 0.0
    %200 = vmatpush1.msra.mxu0 %v92
    %201 = vmatprep.subr.mxu0 0.0
    %202 = vmatpush1.msra.mxu0 %v91
    %203 = vmatprep.subr.mxu0 0.0
    %204 = vmatpush2.msra.mxu0 0.0
    %205 = vmatprep.subr.mxu0 0.0
    %206 = vmatpush2.msra.mxu0 0.0
    %207 = vmatprep.subr.mxu0 0.0
    %208 = vmatpush2.msra.mxu0 0.0
    %209 = vmatprep.subr.mxu0 0.0
    %210 = vmatpush2.msra.mxu0 0.0
    %211 = vmatprep.subr.mxu0 0.0
    %212 = vmatpush2.msra.mxu0 0.0
    %213 = vmatprep.subr.mxu0 0.0
    %214 = vmatpush2.msra.mxu0 0.0
    %215 = vmatprep.subr.mxu0 0.0
    %216 = vmatpush2.msra.mxu0 0.0
    %217 = vmatprep.subr.mxu0 0.0
    %218 = vmatpush2.msra.mxu0 0.0
    %219 = vmatprep.subr.mxu0 0.0
    %220 = vmatpush2.msra.mxu0 %v114
    %221 = vmatprep.subr.mxu0 0.0
    %222 = vmatpush2.msra.mxu0 %v113
    %223 = vmatprep.subr.mxu0 0.0
    %224 = vmatpush2.msra.mxu0 %v112
    %225 = vmatprep.subr.mxu0 0.0
    %226 = vmatpush2.msra.mxu0 %v111
    %227 = vmatprep.subr.mxu0 0.0
    %228 = vmatpush2.msra.mxu0 %v110
    %229 = vmatprep.subr.mxu0 0.0
    %230 = vmatpush2.msra.mxu0 %v109
    %231 = vmatprep.subr.mxu0 0.0
    %232 = vmatpush2.msra.mxu0 %v108
    %233 = vmatprep.subr.mxu0 0.0
    %234 = vmatpush2.msra.mxu0 %v107
    %235 = vmatprep.mubr.f32.mxu0 %v124
    %236 = vmatmul.mubr.f32.gmra.mxu0 %v59
    %v237 = vpop.f32.mrf.mxu0
    %v238 = vadd.f32 %v120, %v237
    %v239 = vpop.f32.mrf.mxu0
    %240 = vmatprep.mubr.f32.mxu0 %v127
    %241 = vmatmul.mubr.f32.gmra.mxu0 %v61
    %v242 = vpop.f32.mrf.mxu0
    %v243 = vadd.f32 %v120, %v242
    %v244 = vpop.f32.mrf.mxu0
    %245 = vmatprep.mubr.f32.mxu0 %v130
    %246 = vmatmul.mubr.f32.gmra.mxu0 %v63
    %v247 = vpop.f32.mrf.mxu0
    %v248 = vadd.f32 %v120, %v247
    %v249 = vpop.f32.mrf.mxu0
    %250 = vmatprep.mubr.f32.mxu0 %v133
    %251 = vmatmul.mubr.f32.gmra.mxu0 %v65
    %v252 = vpop.f32.mrf.mxu0
    %v253 = vadd.f32 %v120, %v252
    %v254 = vpop.f32.mrf.mxu0
    %255 = vmatprep.mubr.f32.mxu0 %v136
    %256 = vmatmul.mubr.f32.gmra.mxu0 %v67
    %v257 = vpop.f32.mrf.mxu0
    %v258 = vadd.f32 %v120, %v257
    %v259 = vpop.f32.mrf.mxu0
    %260 = vmatprep.mubr.f32.mxu0 %v139
    %261 = vmatmul.mubr.f32.gmra.mxu0 %v69
    %v262 = vpop.f32.mrf.mxu0
    %v263 = vadd.f32 %v120, %v262
    %v264 = vpop.f32.mrf.mxu0
    %265 = vmatprep.mubr.f32.mxu0 %v142
    %266 = vmatmul.mubr.f32.gmra.mxu0 %v71
    %v267 = vpop.f32.mrf.mxu0
    %v268 = vadd.f32 %v120, %v267
    %v269 = vpop.f32.mrf.mxu0
    %270 = vmatprep.mubr.f32.mxu0 %v145
    %271 = vmatmul.mubr.f32.gmra.mxu0 %v73
    %v272 = vpop.f32.mrf.mxu0
    %v273 = vadd.f32 %v120, %v272
    %v274 = vpop.f32.mrf.mxu0
    %275 = vmatprep.mubr.f32.mxu0 %v148
    %276 = vmatmul.mubr.f32.gmra.mxu0 %v75
    %v277 = vpop.f32.mrf.mxu0
    %v278 = vadd.f32 %v120, %v277
    %v279 = vpop.f32.mrf.mxu0
    %280 = vmatprep.mubr.f32.mxu0 %v151
    %281 = vmatmul.mubr.f32.gmra.mxu0 %v77
    %v282 = vpop.f32.mrf.mxu0
    %v283 = vadd.f32 %v120, %v282
    %v284 = vpop.f32.mrf.mxu0
    %285 = vmatprep.mubr.f32.mxu0 %v154
    %286 = vmatmul.mubr.f32.gmra.mxu0 %v79
    %v287 = vpop.f32.mrf.mxu0
    %v288 = vadd.f32 %v120, %v287
    %v289 = vpop.f32.mrf.mxu0
    %290 = vmatprep.mubr.f32.mxu0 %v157
    %291 = vmatmul.mubr.f32.gmra.mxu0 %v81
    %v292 = vpop.f32.mrf.mxu0
    %v293 = vadd.f32 %v120, %v292
    %v294 = vpop.f32.mrf.mxu0
    %295 = vmatprep.mubr.f32.mxu0 %v160
    %296 = vmatmul.mubr.f32.gmra.mxu0 %v83
    %v297 = vpop.f32.mrf.mxu0
    %v298 = vadd.f32 %v120, %v297
    %v299 = vpop.f32.mrf.mxu0
    %300 = vmatprep.mubr.f32.mxu0 %v163
    %301 = vmatmul.mubr.f32.gmra.mxu0 %v85
    %v302 = vpop.f32.mrf.mxu0
    %v303 = vadd.f32 %v120, %v302
    %v304 = vpop.f32.mrf.mxu0
    %305 = vmatprep.mubr.f32.mxu0 %v166
    %306 = vmatmul.mubr.f32.gmra.mxu0 %v87
    %v307 = vpop.f32.mrf.mxu0
    %v308 = vadd.f32 %v120, %v307
    %v309 = vpop.f32.mrf.mxu0
    %310 = vmatprep.mubr.f32.mxu0 %v169
    %311 = vmatmul.mubr.f32.gmra.mxu0 %v89
    %v312 = vpop.f32.mrf.mxu0
    %v313 = vadd.f32 %v120, %v312
    %v314 = vpop.f32.mrf.mxu0
    %315 = vdwg.mxu0
    %v316 = vmax.f32 %v238, 0.0
    %v317 = vmax.f32 %v243, 0.0
    %v318 = vmax.f32 %v248, 0.0
    %v319 = vmax.f32 %v253, 0.0
    %v320 = vmax.f32 %v258, 0.0
    %v321 = vmax.f32 %v263, 0.0
    %v322 = vmax.f32 %v268, 0.0
    %v323 = vmax.f32 %v273, 0.0
    %v324 = vmax.f32 %v278, 0.0
    %v325 = vmax.f32 %v283, 0.0
    %v326 = vmax.f32 %v288, 0.0
    %v327 = vmax.f32 %v293, 0.0
    %v328 = vmax.f32 %v298, 0.0
    %v329 = vmax.f32 %v303, 0.0
    %v330 = vmax.f32 %v308, 0.0
    %v331 = vmax.f32 %v313, 0.0
    %v332 = vld [vmem:[#allocation4 + $0x1] sm:$0x1]
    %v333 = vld [vmem:[#allocation4 + $0x2] sm:$0x1]
    %v334 = vadd.f32 %v316, %v317
    %v335 = vadd.f32 %v334, %v318
    %v336 = vadd.f32 %v335, %v319
    %v337 = vadd.f32 %v336, %v320
    %v338 = vadd.f32 %v337, %v321
    %v339 = vadd.f32 %v338, %v322
    %v340 = vadd.f32 %v339, %v323
    %v341 = vrot.slane %v340, 4
    %v342 = vadd.f32 %v340, %v341
    %v343 = vrot.slane %v342, 2
    %v344 = vadd.f32 %v342, %v343
    %v345 = vrot.slane %v344, 1
    %v346 = vadd.f32 %v344, %v345
    %v347 = vrcp.pop 64.0
    %v348 = vmul.f32 %v346, %v347
    %v349 = vsub.f32 %v316, %v348
    %v350 = vsub.f32 %v317, %v348
    %v351 = vsub.f32 %v318, %v348
    %v352 = vsub.f32 %v319, %v348
    %v353 = vsub.f32 %v320, %v348
    %v354 = vsub.f32 %v321, %v348
    %v355 = vsub.f32 %v322, %v348
    %v356 = vsub.f32 %v323, %v348
    %v357 = vmul.f32 %v349, %v349
    %v358 = vmul.f32 %v350, %v350
    %v359 = vmul.f32 %v351, %v351
    %v360 = vmul.f32 %v352, %v352
    %v361 = vmul.f32 %v353, %v353
    %v362 = vmul.f32 %v354, %v354
    %v363 = vmul.f32 %v355, %v355
    %v364 = vmul.f32 %v356, %v356
    %v365 = vadd.f32 %v357, %v358
    %v366 = vadd.f32 %v365, %v359
    %v367 = vadd.f32 %v366, %v360
    %v368 = vadd.f32 %v367, %v361
    %v369 = vadd.f32 %v368, %v362
    %v370 = vadd.f32 %v369, %v363
    %v371 = vadd.f32 %v370, %v364
    %v372 = vrot.slane %v371, 4
    %v373 = vadd.f32 %v371, %v372
    %v374 = vrot.slane %v373, 2
    %v375 = vadd.f32 %v373, %v374
    %v376 = vrot.slane %v375, 1
    %v377 = vadd.f32 %v375, %v376
    %v378 = vmul.f32 %v377, %v347
    %v379 = vadd.f32 %v378, 1e-05
    %v380 = vrsqrt.pop %v379
    %v381 = vmul.f32 %v332, %v380
    %v383 = vlaneseq
    %v384 = vshrl.u32 %v383, 7
    %v385 = vsub.s32 0, %v384
    %v386 = vrot.slane %v381, %v385
    %v388 = vmul.f32 %v349, %v386
    %v389 = vmul.f32 %v350, %v386
    %v390 = vmul.f32 %v351, %v386
    %v391 = vmul.f32 %v352, %v386
    %v392 = vmul.f32 %v353, %v386
    %v393 = vmul.f32 %v354, %v386
    %v394 = vmul.f32 %v355, %v386
    %v395 = vmul.f32 %v356, %v386
    %v397 = vlaneseq
    %v398 = vshrl.u32 %v397, 7
    %v399 = vsub.s32 0, %v398
    %v400 = vrot.slane %v333, %v399
    %v402 = vadd.f32 %v388, %v400
    %v403 = vadd.f32 %v389, %v400
    %v404 = vadd.f32 %v390, %v400
    %v405 = vadd.f32 %v391, %v400
    %v406 = vadd.f32 %v392, %v400
    %v407 = vadd.f32 %v393, %v400
    %v408 = vadd.f32 %v394, %v400
    %v409 = vadd.f32 %v395, %v400
    %v410 = vadd.f32 %v324, %v325
    %v411 = vadd.f32 %v410, %v326
    %v412 = vadd.f32 %v411, %v327
    %v413 = vadd.f32 %v412, %v328
    %v414 = vadd.f32 %v413, %v329
    %v415 = vadd.f32 %v414, %v330
    %v416 = vadd.f32 %v415, %v331
    %v417 = vrot.slane %v416, 4
    %v418 = vadd.f32 %v416, %v417
    %v419 = vrot.slane %v418, 2
    %v420 = vadd.f32 %v418, %v419
    %v421 = vrot.slane %v420, 1
    %v422 = vadd.f32 %v420, %v421
    %v423 = vmul.f32 %v422, %v347
    %v424 = vsub.f32 %v324, %v423
    %v425 = vsub.f32 %v325, %v423
    %v426 = vsub.f32 %v326, %v423
    %v427 = vsub.f32 %v327, %v423
    %v428 = vsub.f32 %v328, %v423
    %v429 = vsub.f32 %v329, %v423
    %v430 = vsub.f32 %v330, %v423
    %v431 = vsub.f32 %v331, %v423
    %v432 = vmul.f32 %v424, %v424
    %v433 = vmul.f32 %v425, %v425
    %v434 = vmul.f32 %v426, %v426
    %v435 = vmul.f32 %v427, %v427
    %v436 = vmul.f32 %v428, %v428
    %v437 = vmul.f32 %v429, %v429
    %v438 = vmul.f32 %v430, %v430
    %v439 = vmul.f32 %v431, %v431
    %v440 = vadd.f32 %v432, %v433
    %v441 = vadd.f32 %v440, %v434
    %v442 = vadd.f32 %v441, %v435
    %v443 = vadd.f32 %v442, %v436
    %v444 = vadd.f32 %v443, %v437
    %v445 = vadd.f32 %v444, %v438
    %v446 = vadd.f32 %v445, %v439
    %v447 = vrot.slane %v446, 4
    %v448 = vadd.f32 %v446, %v447
    %v449 = vrot.slane %v448, 2
    %v450 = vadd.f32 %v448, %v449
    %v451 = vrot.slane %v450, 1
    %v452 = vadd.f32 %v450, %v451
    %v453 = vmul.f32 %v452, %v347
    %v454 = vadd.f32 %v453, 1e-05
    %v455 = vrsqrt.pop %v454
    %v456 = vmul.f32 %v332, %v455
    %v458 = vlaneseq
    %v459 = vshrl.u32 %v458, 7
    %v460 = vsub.s32 0, %v459
    %v461 = vrot.slane %v456, %v460
    %v463 = vmul.f32 %v424, %v461
    %v464 = vmul.f32 %v425, %v461
    %v465 = vmul.f32 %v426, %v461
    %v466 = vmul.f32 %v427, %v461
    %v467 = vmul.f32 %v428, %v461
    %v468 = vmul.f32 %v429, %v461
    %v469 = vmul.f32 %v430, %v461
    %v470 = vmul.f32 %v431, %v461
    %v471 = vadd.f32 %v463, %v400
    %v472 = vadd.f32 %v464, %v400
    %v473 = vadd.f32 %v465, %v400
    %v474 = vadd.f32 %v466, %v400
    %v475 = vadd.f32 %v467, %v400
    %v476 = vadd.f32 %v468, %v400
    %v477 = vadd.f32 %v469, %v400
    %v478 = vadd.f32 %v470, %v400
    %v479 = vld [vmem:[#allocation6 + $0xc0] sm:$0xff]
    %v480 = vld [vmem:[#allocation6 + $0xc8] sm:$0xff]
    %v481 = vld [vmem:[#allocation6 + $0xd0] sm:$0xff]
    %v482 = vld [vmem:[#allocation6 + $0xd8] sm:$0xff]
    %v483 = vld [vmem:[#allocation6 + $0xe0] sm:$0xff]
    %v484 = vld [vmem:[#allocation6 + $0xe8] sm:$0xff]
    %v485 = vld [vmem:[#allocation6 + $0xf0] sm:$0xff]
    %v486 = vld [vmem:[#allocation6 + $0xf8] sm:$0xff]
    %v487 = vld [vmem:[#allocation6 + $0x100] sm:$0xff]
    %v488 = vld [vmem:[#allocation6 + $0x108] sm:$0xff]
    %v489 = vld [vmem:[#allocation6 + $0x110] sm:$0xff]
    %v490 = vld [vmem:[#allocation6 + $0x118] sm:$0xff]
    %v491 = vld [vmem:[#allocation6 + $0x120] sm:$0xff]
    %v492 = vld [vmem:[#allocation6 + $0x128] sm:$0xff]
    %v493 = vld [vmem:[#allocation6 + $0x130] sm:$0xff]
    %v494 = vld [vmem:[#allocation6 + $0x138] sm:$0xff]
    %v495 = vld [vmem:[#allocation4 + $0x3] sm:$0x1]
    %v497 = vlaneseq
    %v498 = vshrl.u32 %v497, 7
    %v499 = vsub.s32 0, %v498
    %v500 = vrot.slane %v495, %v499
    %502 = vmatprep.subr.mxu0 0.0
    %503 = vmatpush1.msra.mxu0 %v494
    %504 = vmatprep.subr.mxu0 0.0
    %505 = vmatpush1.msra.mxu0 %v493
    %506 = vmatprep.subr.mxu0 0.0
    %507 = vmatpush1.msra.mxu0 %v492
    %508 = vmatprep.subr.mxu0 0.0
    %509 = vmatpush1.msra.mxu0 %v491
    %510 = vmatprep.subr.mxu0 0.0
    %511 = vmatpush1.msra.mxu0 %v490
    %512 = vmatprep.subr.mxu0 0.0
    %513 = vmatpush1.msra.mxu0 %v489
    %514 = vmatprep.subr.mxu0 0.0
    %515 = vmatpush1.msra.mxu0 %v488
    %516 = vmatprep.subr.mxu0 0.0
    %517 = vmatpush1.msra.mxu0 %v487
    %518 = vmatprep.subr.mxu0 0.0
    %519 = vmatpush1.msra.mxu0 %v486
    %520 = vmatprep.subr.mxu0 0.0
    %521 = vmatpush1.msra.mxu0 %v485
    %522 = vmatprep.subr.mxu0 0.0
    %523 = vmatpush1.msra.mxu0 %v484
    %524 = vmatprep.subr.mxu0 0.0
    %525 = vmatpush1.msra.mxu0 %v483
    %526 = vmatprep.subr.mxu0 0.0
    %527 = vmatpush1.msra.mxu0 %v482
    %528 = vmatprep.subr.mxu0 0.0
    %529 = vmatpush1.msra.mxu0 %v481
    %530 = vmatprep.subr.mxu0 0.0
    %531 = vmatpush1.msra.mxu0 %v480
    %532 = vmatprep.subr.mxu0 0.0
    %533 = vmatpush1.msra.mxu0 %v479
    %534 = vmatprep.subr.mxu0 0.0
    %535 = vmatpush2.msra.mxu0 0.0
    %536 = vmatprep.subr.mxu0 0.0
    %537 = vmatpush2.msra.mxu0 0.0
    %538 = vmatprep.subr.mxu0 0.0
    %539 = vmatpush2.msra.mxu0 0.0
    %540 = vmatprep.subr.mxu0 0.0
    %541 = vmatpush2.msra.mxu0 0.0
    %542 = vmatprep.subr.mxu0 0.0
    %543 = vmatpush2.msra.mxu0 0.0
    %544 = vmatprep.subr.mxu0 0.0
    %545 = vmatpush2.msra.mxu0 0.0
    %546 = vmatprep.subr.mxu0 0.0
    %547 = vmatpush2.msra.mxu0 0.0
    %548 = vmatprep.subr.mxu0 0.0
    %549 = vmatpush2.msra.mxu0 0.0
    %550 = vmatprep.subr.mxu0 0.0
    %551 = vmatpush2.msra.mxu0 0.0
    %552 = vmatprep.subr.mxu0 0.0
    %553 = vmatpush2.msra.mxu0 0.0
    %554 = vmatprep.subr.mxu0 0.0
    %555 = vmatpush2.msra.mxu0 0.0
    %556 = vmatprep.subr.mxu0 0.0
    %557 = vmatpush2.msra.mxu0 0.0
    %558 = vmatprep.subr.mxu0 0.0
    %559 = vmatpush2.msra.mxu0 0.0
    %560 = vmatprep.subr.mxu0 0.0
    %561 = vmatpush2.msra.mxu0 0.0
    %562 = vmatprep.subr.mxu0 0.0
    %563 = vmatpush2.msra.mxu0 0.0
    %564 = vmatprep.subr.mxu0 0.0
    %565 = vmatpush2.msra.mxu0 0.0
    %566 = vmatprep.mubr.f32.mxu0 0.0
    %567 = vmatmul.mubr.f32.gmra.mxu0 %v402
    %v568 = vpop.f32.mrf.mxu0
    %v569 = vadd.f32 %v500, %v568
    %v570 = vpop.f32.mrf.mxu0
    %571 = vmatprep.mubr.f32.mxu0 0.0
    %572 = vmatmul.mubr.f32.gmra.mxu0 %v403
    %v573 = vpop.f32.mrf.mxu0
    %v574 = vadd.f32 %v500, %v573
    %v575 = vpop.f32.mrf.mxu0
    %576 = vmatprep.mubr.f32.mxu0 0.0
    %577 = vmatmul.mubr.f32.gmra.mxu0 %v404
    %v578 = vpop.f32.mrf.mxu0
    %v579 = vadd.f32 %v500, %v578
    %v580 = vpop.f32.mrf.mxu0
    %581 = vmatprep.mubr.f32.mxu0 0.0
    %582 = vmatmul.mubr.f32.gmra.mxu0 %v405
    %v583 = vpop.f32.mrf.mxu0
    %v584 = vadd.f32 %v500, %v583
    %v585 = vpop.f32.mrf.mxu0
    %586 = vmatprep.mubr.f32.mxu0 0.0
    %587 = vmatmul.mubr.f32.gmra.mxu0 %v406
    %v588 = vpop.f32.mrf.mxu0
    %v589 = vadd.f32 %v500, %v588
    %v590 = vpop.f32.mrf.mxu0
    %591 = vmatprep.mubr.f32.mxu0 0.0
    %592 = vmatmul.mubr.f32.gmra.mxu0 %v407
    %v593 = vpop.f32.mrf.mxu0
    %v594 = vadd.f32 %v500, %v593
    %v595 = vpop.f32.mrf.mxu0
    %596 = vmatprep.mubr.f32.mxu0 0.0
    %597 = vmatmul.mubr.f32.gmra.mxu0 %v408
    %v598 = vpop.f32.mrf.mxu0
    %v599 = vadd.f32 %v500, %v598
    %v600 = vpop.f32.mrf.mxu0
    %601 = vmatprep.mubr.f32.mxu0 0.0
    %602 = vmatmul.mubr.f32.gmra.mxu0 %v409
    %v603 = vpop.f32.mrf.mxu0
    %v604 = vadd.f32 %v500, %v603
    %v605 = vpop.f32.mrf.mxu0
    %606 = vmatprep.mubr.f32.mxu0 0.0
    %607 = vmatmul.mubr.f32.gmra.mxu0 %v471
    %v608 = vpop.f32.mrf.mxu0
    %v609 = vadd.f32 %v500, %v608
    %v610 = vpop.f32.mrf.mxu0
    %611 = vmatprep.mubr.f32.mxu0 0.0
    %612 = vmatmul.mubr.f32.gmra.mxu0 %v472
    %v613 = vpop.f32.mrf.mxu0
    %v614 = vadd.f32 %v500, %v613
    %v615 = vpop.f32.mrf.mxu0
    %616 = vmatprep.mubr.f32.mxu0 0.0
    %617 = vmatmul.mubr.f32.gmra.mxu0 %v473
    %v618 = vpop.f32.mrf.mxu0
    %v619 = vadd.f32 %v500, %v618
    %v620 = vpop.f32.mrf.mxu0
    %621 = vmatprep.mubr.f32.mxu0 0.0
    %622 = vmatmul.mubr.f32.gmra.mxu0 %v474
    %v623 = vpop.f32.mrf.mxu0
    %v624 = vadd.f32 %v500, %v623
    %v625 = vpop.f32.mrf.mxu0
    %626 = vmatprep.mubr.f32.mxu0 0.0
    %627 = vmatmul.mubr.f32.gmra.mxu0 %v475
    %v628 = vpop.f32.mrf.mxu0
    %v629 = vadd.f32 %v500, %v628
    %v630 = vpop.f32.mrf.mxu0
    %631 = vmatprep.mubr.f32.mxu0 0.0
    %632 = vmatmul.mubr.f32.gmra.mxu0 %v476
    %v633 = vpop.f32.mrf.mxu0
    %v634 = vadd.f32 %v500, %v633
    %v635 = vpop.f32.mrf.mxu0
    %636 = vmatprep.mubr.f32.mxu0 0.0
    %637 = vmatmul.mubr.f32.gmra.mxu0 %v477
    %v638 = vpop.f32.mrf.mxu0
    %v639 = vadd.f32 %v500, %v638
    %v640 = vpop.f32.mrf.mxu0
    %641 = vmatprep.mubr.f32.mxu0 0.0
    %642 = vmatmul.mubr.f32.gmra.mxu0 %v478
    %v643 = vpop.f32.mrf.mxu0
    %v644 = vadd.f32 %v500, %v643
    %v645 = vpop.f32.mrf.mxu0
    %646 = vdwg.mxu0
    %v647 = vmax.f32 %v569, 0.0
    %v648 = vmax.f32 %v574, 0.0
    %v649 = vmax.f32 %v579, 0.0
    %v650 = vmax.f32 %v584, 0.0
    %v651 = vmax.f32 %v589, 0.0
    %v652 = vmax.f32 %v594, 0.0
    %v653 = vmax.f32 %v599, 0.0
    %v654 = vmax.f32 %v604, 0.0
    %v655 = vmax.f32 %v609, 0.0
    %v656 = vmax.f32 %v614, 0.0
    %v657 = vmax.f32 %v619, 0.0
    %v658 = vmax.f32 %v624, 0.0
    %v659 = vmax.f32 %v629, 0.0
    %v660 = vmax.f32 %v634, 0.0
    %v661 = vmax.f32 %v639, 0.0
    %v662 = vmax.f32 %v644, 0.0
    %v663 = vld [vmem:[#allocation6 + $0x140] sm:$0xff]
    %v664 = vld [vmem:[#allocation6 + $0x148] sm:$0xff]
    %v665 = vld [vmem:[#allocation6 + $0x150] sm:$0xff]
    %v666 = vld [vmem:[#allocation6 + $0x158] sm:$0xff]
    %v667 = vld [vmem:[#allocation6 + $0x160] sm:$0xff]
    %v668 = vld [vmem:[#allocation6 + $0x168] sm:$0xff]
    %v669 = vld [vmem:[#allocation6 + $0x170] sm:$0xff]
    %v670 = vld [vmem:[#allocation6 + $0x178] sm:$0xff]
    %v671 = vld [vmem:[#allocation6 + $0x180] sm:$0xff]
    %v672 = vld [vmem:[#allocation6 + $0x188] sm:$0xff]
    %v673 = vld [vmem:[#allocation6 + $0x190] sm:$0xff]
    %v674 = vld [vmem:[#allocation6 + $0x198] sm:$0xff]
    %v675 = vld [vmem:[#allocation6 + $0x1a0] sm:$0xff]
    %v676 = vld [vmem:[#allocation6 + $0x1a8] sm:$0xff]
    %v677 = vld [vmem:[#allocation6 + $0x1b0] sm:$0xff]
    %v678 = vld [vmem:[#allocation6 + $0x1b8] sm:$0xff]
    %v679 = vld [vmem:[#allocation4 + $0x4] sm:$0x1]
    %v681 = vlaneseq
    %v682 = vshrl.u32 %v681, 7
    %v683 = vsub.s32 0, %v682
    %v684 = vrot.slane %v679, %v683
    %686 = vmatprep.subr.mxu0 0.0
    %687 = vmatpush1.msra.mxu0 %v678
    %688 = vmatprep.subr.mxu0 0.0
    %689 = vmatpush1.msra.mxu0 %v677
    %690 = vmatprep.subr.mxu0 0.0
    %691 = vmatpush1.msra.mxu0 %v676
    %692 = vmatprep.subr.mxu0 0.0
    %693 = vmatpush1.msra.mxu0 %v675
    %694 = vmatprep.subr.mxu0 0.0
    %695 = vmatpush1.msra.mxu0 %v674
    %696 = vmatprep.subr.mxu0 0.0
    %697 = vmatpush1.msra.mxu0 %v673
    %698 = vmatprep.subr.mxu0 0.0
    %699 = vmatpush1.msra.mxu0 %v672
    %700 = vmatprep.subr.mxu0 0.0
    %701 = vmatpush1.msra.mxu0 %v671
    %702 = vmatprep.subr.mxu0 0.0
    %703 = vmatpush1.msra.mxu0 %v670
    %704 = vmatprep.subr.mxu0 0.0
    %705 = vmatpush1.msra.mxu0 %v669
    %706 = vmatprep.subr.mxu0 0.0
    %707 = vmatpush1.msra.mxu0 %v668
    %708 = vmatprep.subr.mxu0 0.0
    %709 = vmatpush1.msra.mxu0 %v667
    %710 = vmatprep.subr.mxu0 0.0
    %711 = vmatpush1.msra.mxu0 %v666
    %712 = vmatprep.subr.mxu0 0.0
    %713 = vmatpush1.msra.mxu0 %v665
    %714 = vmatprep.subr.mxu0 0.0
    %715 = vmatpush1.msra.mxu0 %v664
    %716 = vmatprep.subr.mxu0 0.0
    %717 = vmatpush1.msra.mxu0 %v663
    %718 = vmatprep.subr.mxu0 0.0
    %719 = vmatpush2.msra.mxu0 0.0
    %720 = vmatprep.subr.mxu0 0.0
    %721 = vmatpush2.msra.mxu0 0.0
    %722 = vmatprep.subr.mxu0 0.0
    %723 = vmatpush2.msra.mxu0 0.0
    %724 = vmatprep.subr.mxu0 0.0
    %725 = vmatpush2.msra.mxu0 0.0
    %726 = vmatprep.subr.mxu0 0.0
    %727 = vmatpush2.msra.mxu0 0.0
    %728 = vmatprep.subr.mxu0 0.0
    %729 = vmatpush2.msra.mxu0 0.0
    %730 = vmatprep.subr.mxu0 0.0
    %731 = vmatpush2.msra.mxu0 0.0
    %732 = vmatprep.subr.mxu0 0.0
    %733 = vmatpush2.msra.mxu0 0.0
    %734 = vmatprep.subr.mxu0 0.0
    %735 = vmatpush2.msra.mxu0 0.0
    %736 = vmatprep.subr.mxu0 0.0
    %737 = vmatpush2.msra.mxu0 0.0
    %738 = vmatprep.subr.mxu0 0.0
    %739 = vmatpush2.msra.mxu0 0.0
    %740 = vmatprep.subr.mxu0 0.0
    %741 = vmatpush2.msra.mxu0 0.0
    %742 = vmatprep.subr.mxu0 0.0
    %743 = vmatpush2.msra.mxu0 0.0
    %744 = vmatprep.subr.mxu0 0.0
    %745 = vmatpush2.msra.mxu0 0.0
    %746 = vmatprep.subr.mxu0 0.0
    %747 = vmatpush2.msra.mxu0 0.0
    %748 = vmatprep.subr.mxu0 0.0
    %749 = vmatpush2.msra.mxu0 0.0
    %750 = vmatprep.mubr.f32.mxu0 0.0
    %751 = vmatmul.mubr.f32.gmra.mxu0 %v647
    %v752 = vpop.f32.mrf.mxu0
    %v753 = vadd.f32 %v684, %v752
    %v754 = vpop.f32.mrf.mxu0
    %755 = vmatprep.mubr.f32.mxu0 0.0
    %756 = vmatmul.mubr.f32.gmra.mxu0 %v648
    %v757 = vpop.f32.mrf.mxu0
    %v758 = vadd.f32 %v684, %v757
    %v759 = vpop.f32.mrf.mxu0
    %760 = vmatprep.mubr.f32.mxu0 0.0
    %761 = vmatmul.mubr.f32.gmra.mxu0 %v649
    %v762 = vpop.f32.mrf.mxu0
    %v763 = vadd.f32 %v684, %v762
    %v764 = vpop.f32.mrf.mxu0
    %765 = vmatprep.mubr.f32.mxu0 0.0
    %766 = vmatmul.mubr.f32.gmra.mxu0 %v650
    %v767 = vpop.f32.mrf.mxu0
    %v768 = vadd.f32 %v684, %v767
    %v769 = vpop.f32.mrf.mxu0
    %770 = vmatprep.mubr.f32.mxu0 0.0
    %771 = vmatmul.mubr.f32.gmra.mxu0 %v651
    %v772 = vpop.f32.mrf.mxu0
    %v773 = vadd.f32 %v684, %v772
    %v774 = vpop.f32.mrf.mxu0
    %775 = vmatprep.mubr.f32.mxu0 0.0
    %776 = vmatmul.mubr.f32.gmra.mxu0 %v652
    %v777 = vpop.f32.mrf.mxu0
    %v778 = vadd.f32 %v684, %v777
    %v779 = vpop.f32.mrf.mxu0
    %780 = vmatprep.mubr.f32.mxu0 0.0
    %781 = vmatmul.mubr.f32.gmra.mxu0 %v653
    %v782 = vpop.f32.mrf.mxu0
    %v783 = vadd.f32 %v684, %v782
    %v784 = vpop.f32.mrf.mxu0
    %785 = vmatprep.mubr.f32.mxu0 0.0
    %786 = vmatmul.mubr.f32.gmra.mxu0 %v654
    %v787 = vpop.f32.mrf.mxu0
    %v788 = vadd.f32 %v684, %v787
    %v789 = vpop.f32.mrf.mxu0
    %790 = vmatprep.mubr.f32.mxu0 0.0
    %791 = vmatmul.mubr.f32.gmra.mxu0 %v655
    %v792 = vpop.f32.mrf.mxu0
    %v793 = vadd.f32 %v684, %v792
    %v794 = vpop.f32.mrf.mxu0
    %795 = vmatprep.mubr.f32.mxu0 0.0
    %796 = vmatmul.mubr.f32.gmra.mxu0 %v656
    %v797 = vpop.f32.mrf.mxu0
    %v798 = vadd.f32 %v684, %v797
    %v799 = vpop.f32.mrf.mxu0
    %800 = vmatprep.mubr.f32.mxu0 0.0
    %801 = vmatmul.mubr.f32.gmra.mxu0 %v657
    %v802 = vpop.f32.mrf.mxu0
    %v803 = vadd.f32 %v684, %v802
    %v804 = vpop.f32.mrf.mxu0
    %805 = vmatprep.mubr.f32.mxu0 0.0
    %806 = vmatmul.mubr.f32.gmra.mxu0 %v658
    %v807 = vpop.f32.mrf.mxu0
    %v808 = vadd.f32 %v684, %v807
    %v809 = vpop.f32.mrf.mxu0
    %810 = vmatprep.mubr.f32.mxu0 0.0
    %811 = vmatmul.mubr.f32.gmra.mxu0 %v659
    %v812 = vpop.f32.mrf.mxu0
    %v813 = vadd.f32 %v684, %v812
    %v814 = vpop.f32.mrf.mxu0
    %815 = vmatprep.mubr.f32.mxu0 0.0
    %816 = vmatmul.mubr.f32.gmra.mxu0 %v660
    %v817 = vpop.f32.mrf.mxu0
    %v818 = vadd.f32 %v684, %v817
    %v819 = vpop.f32.mrf.mxu0
    %820 = vmatprep.mubr.f32.mxu0 0.0
    %821 = vmatmul.mubr.f32.gmra.mxu0 %v661
    %v822 = vpop.f32.mrf.mxu0
    %v823 = vadd.f32 %v684, %v822
    %v824 = vpop.f32.mrf.mxu0
    %825 = vmatprep.mubr.f32.mxu0 0.0
    %826 = vmatmul.mubr.f32.gmra.mxu0 %v662
    %v827 = vpop.f32.mrf.mxu0
    %v828 = vadd.f32 %v684, %v827
    %v829 = vpop.f32.mrf.mxu0
    %830 = vdwg.mxu0
    %v831 = vld [vmem:[%s3] sm:$0xff]
    %v832 = vld [vmem:[%s3 + $0x8] sm:$0xff]
    %v833 = vld [vmem:[%s3 + $0x10] sm:$0xff]
    %v834 = vld [vmem:[%s3 + $0x18] sm:$0xff]
    %v835 = vld [vmem:[%s3 + $0x20] sm:$0xff]
    %v836 = vld [vmem:[%s3 + $0x28] sm:$0xff]
    %v837 = vld [vmem:[%s3 + $0x30] sm:$0xff]
    %v838 = vld [vmem:[%s3 + $0x38] sm:$0xff]
    %v839 = vld [vmem:[%s3 + $0x40] sm:$0xff]
    %v840 = vld [vmem:[%s3 + $0x48] sm:$0xff]
    %v841 = vld [vmem:[%s3 + $0x50] sm:$0xff]
    %v842 = vld [vmem:[%s3 + $0x58] sm:$0xff]
    %v843 = vld [vmem:[%s3 + $0x60] sm:$0xff]
    %v844 = vld [vmem:[%s3 + $0x68] sm:$0xff]
    %v845 = vld [vmem:[%s3 + $0x70] sm:$0xff]
    %v846 = vld [vmem:[%s3 + $0x78] sm:$0xff]
    %v847 = vld [vmem:[%s3 + $0x80] sm:$0xff]
    %v848 = vld [vmem:[%s3 + $0x88] sm:$0xff]
    %v849 = vld [vmem:[%s3 + $0x90] sm:$0xff]
    %v850 = vld [vmem:[%s3 + $0x98] sm:$0xff]
    %v851 = vld [vmem:[%s3 + $0xa0] sm:$0xff]
    %v852 = vld [vmem:[%s3 + $0xa8] sm:$0xff]
    %v853 = vld [vmem:[%s3 + $0xb0] sm:$0xff]
    %v854 = vld [vmem:[%s3 + $0xb8] sm:$0xff]
    %v855 = vld [vmem:[%s3 + $0xc0] sm:$0xff]
    %v856 = vld [vmem:[%s3 + $0xc8] sm:$0xff]
    %v857 = vld [vmem:[%s3 + $0xd0] sm:$0xff]
    %v858 = vld [vmem:[%s3 + $0xd8] sm:$0xff]
    %v859 = vld [vmem:[%s3 + $0xe0] sm:$0xff]
    %v860 = vld [vmem:[%s3 + $0xe8] sm:$0xff]
    %v861 = vld [vmem:[%s3 + $0xf0] sm:$0xff]
    %v862 = vld [vmem:[%s3 + $0xf8] sm:$0xff]
    %v863 = vld [vmem:[%s3 + $0x100] sm:$0xff]
    %v864 = vld [vmem:[%s3 + $0x108] sm:$0xff]
    %v865 = vld [vmem:[%s3 + $0x110] sm:$0xff]
    %v866 = vld [vmem:[%s3 + $0x118] sm:$0xff]
    %v867 = vld [vmem:[%s3 + $0x120] sm:$0xff]
    %v868 = vld [vmem:[%s3 + $0x128] sm:$0xff]
    %v869 = vld [vmem:[%s3 + $0x130] sm:$0xff]
    %v870 = vld [vmem:[%s3 + $0x138] sm:$0xff]
    %v871 = vld [vmem:[%s3 + $0x140] sm:$0xff]
    %v872 = vld [vmem:[%s3 + $0x148] sm:$0xff]
    %v873 = vld [vmem:[%s3 + $0x150] sm:$0xff]
    %v874 = vld [vmem:[%s3 + $0x158] sm:$0xff]
    %v875 = vld [vmem:[%s3 + $0x160] sm:$0xff]
    %v876 = vld [vmem:[%s3 + $0x168] sm:$0xff]
    %v877 = vld [vmem:[%s3 + $0x170] sm:$0xff]
    %v878 = vld [vmem:[%s3 + $0x178] sm:$0xff]
    %v879 = vld [vmem:[%s3 + $0x180] sm:$0xff]
    %v880 = vld [vmem:[%s3 + $0x188] sm:$0xff]
    %v881 = vld [vmem:[%s3 + $0x190] sm:$0xff]
    %v882 = vld [vmem:[%s3 + $0x198] sm:$0xff]
    %v883 = vld [vmem:[%s3 + $0x1a0] sm:$0xff]
    %v884 = vld [vmem:[%s3 + $0x1a8] sm:$0xff]
    %v885 = vld [vmem:[%s3 + $0x1b0] sm:$0xff]
    %v886 = vld [vmem:[%s3 + $0x1b8] sm:$0xff]
    %v887 = vld [vmem:[%s3 + $0x1c0] sm:$0xff]
    %v888 = vld [vmem:[%s3 + $0x1c8] sm:$0xff]
    %v889 = vld [vmem:[%s3 + $0x1d0] sm:$0xff]
    %v890 = vld [vmem:[%s3 + $0x1d8] sm:$0xff]
    %v891 = vld [vmem:[%s3 + $0x1e0] sm:$0xff]
    %v892 = vld [vmem:[%s3 + $0x1e8] sm:$0xff]
    %v893 = vld [vmem:[%s3 + $0x1f0] sm:$0xff]
    %v894 = vld [vmem:[%s3 + $0x1f8] sm:$0xff]
    %v895 = vld [vmem:[#allocation2] sm:$0xff]
    %v896 = vld [vmem:[#allocation2 + $0x8] sm:$0xff]
    %v897 = vld [vmem:[#allocation2 + $0x10] sm:$0xff]
    %v898 = vld [vmem:[#allocation2 + $0x18] sm:$0xff]
    %v899 = vld [vmem:[#allocation2 + $0x20] sm:$0xff]
    %v900 = vld [vmem:[#allocation2 + $0x28] sm:$0xff]
    %v901 = vld [vmem:[#allocation2 + $0x30] sm:$0xff]
    %v902 = vld [vmem:[#allocation2 + $0x38] sm:$0xff]
    %v903 = vld [vmem:[#allocation2 + $0x40] sm:$0xff]
    %v904 = vld [vmem:[#allocation2 + $0x48] sm:$0xff]
    %v905 = vld [vmem:[#allocation2 + $0x50] sm:$0xff]
    %v906 = vld [vmem:[#allocation2 + $0x58] sm:$0xff]
    %v907 = vld [vmem:[#allocation2 + $0x60] sm:$0xff]
    %v908 = vld [vmem:[#allocation2 + $0x68] sm:$0xff]
    %v909 = vld [vmem:[#allocation2 + $0x70] sm:$0xff]
    %v910 = vld [vmem:[#allocation2 + $0x78] sm:$0xff]
    %v911 = vld [vmem:[#allocation4 + $0x5] sm:$0x3]
    %v913 = vlaneseq
    %v914 = vshrl.u32 %v913, 7
    %v915 = vsub.s32 0, %v914
    %v916 = vrot.slane %v911, %v915
    %v917 = vlaneseq
    %v918 = vshrl.u32 %v917, 7
    %v919 = vsub.s32 1, %v918
    %v920 = vrot.slane %v911, %v919
    %923 = vmatprep.subr.mxu0 %v862
    %924 = vmatpush1.msra.mxu0 %v861
    %925 = vmatprep.subr.mxu0 %v860
    %926 = vmatpush1.msra.mxu0 %v859
    %927 = vmatprep.subr.mxu0 %v858
    %928 = vmatpush1.msra.mxu0 %v857
    %929 = vmatprep.subr.mxu0 %v856
    %930 = vmatpush1.msra.mxu0 %v855
    %931 = vmatprep.subr.mxu0 %v854
    %932 = vmatpush1.msra.mxu0 %v853
    %933 = vmatprep.subr.mxu0 %v852
    %934 = vmatpush1.msra.mxu0 %v851
    %935 = vmatprep.subr.mxu0 %v850
    %936 = vmatpush1.msra.mxu0 %v849
    %937 = vmatprep.subr.mxu0 %v848
    %938 = vmatpush1.msra.mxu0 %v847
    %939 = vmatprep.subr.mxu0 %v846
    %940 = vmatpush1.msra.mxu0 %v845
    %941 = vmatprep.subr.mxu0 %v844
    %942 = vmatpush1.msra.mxu0 %v843
    %943 = vmatprep.subr.mxu0 %v842
    %944 = vmatpush1.msra.mxu0 %v841
    %945 = vmatprep.subr.mxu0 %v840
    %946 = vmatpush1.msra.mxu0 %v839
    %947 = vmatprep.subr.mxu0 %v838
    %948 = vmatpush1.msra.mxu0 %v837
    %949 = vmatprep.subr.mxu0 %v836
    %950 = vmatpush1.msra.mxu0 %v835
    %951 = vmatprep.subr.mxu0 %v834
    %952 = vmatpush1.msra.mxu0 %v833
    %953 = vmatprep.subr.mxu0 %v832
    %954 = vmatpush1.msra.mxu0 %v831
    %955 = vmatprep.subr.mxu0 %v894
    %956 = vmatpush2.msra.mxu0 %v893
    %957 = vmatprep.subr.mxu0 %v892
    %958 = vmatpush2.msra.mxu0 %v891
    %959 = vmatprep.subr.mxu0 %v890
    %960 = vmatpush2.msra.mxu0 %v889
    %961 = vmatprep.subr.mxu0 %v888
    %962 = vmatpush2.msra.mxu0 %v887
    %963 = vmatprep.subr.mxu0 %v886
    %964 = vmatpush2.msra.mxu0 %v885
    %965 = vmatprep.subr.mxu0 %v884
    %966 = vmatpush2.msra.mxu0 %v883
    %967 = vmatprep.subr.mxu0 %v882
    %968 = vmatpush2.msra.mxu0 %v881
    %969 = vmatprep.subr.mxu0 %v880
    %970 = vmatpush2.msra.mxu0 %v879
    %971 = vmatprep.subr.mxu0 %v878
    %972 = vmatpush2.msra.mxu0 %v877
    %973 = vmatprep.subr.mxu0 %v876
    %974 = vmatpush2.msra.mxu0 %v875
    %975 = vmatprep.subr.mxu0 %v874
    %976 = vmatpush2.msra.mxu0 %v873
    %977 = vmatprep.subr.mxu0 %v872
    %978 = vmatpush2.msra.mxu0 %v871
    %979 = vmatprep.subr.mxu0 %v870
    %980 = vmatpush2.msra.mxu0 %v869
    %981 = vmatprep.subr.mxu0 %v868
    %982 = vmatpush2.msra.mxu0 %v867
    %983 = vmatprep.subr.mxu0 %v866
    %984 = vmatpush2.msra.mxu0 %v865
    %985 = vmatprep.subr.mxu0 %v864
    %986 = vmatpush2.msra.mxu0 %v863
    %987 = vmatprep.mubr.f32.mxu0 %v896
    %988 = vmatmul.mubr.f32.gmra.mxu0 %v895
    %v989 = vpop.f32.mrf.mxu0
    %v990 = vadd.f32 %v916, %v989
    %v991 = vpop.f32.mrf.mxu0
    %v992 = vadd.f32 %v920, %v991
    %993 = vmatprep.mubr.f32.mxu0 %v898
    %994 = vmatmul.mubr.f32.gmra.mxu0 %v897
    %v995 = vpop.f32.mrf.mxu0
    %v996 = vadd.f32 %v916, %v995
    %v997 = vpop.f32.mrf.mxu0
    %v998 = vadd.f32 %v920, %v997
    %999 = vmatprep.mubr.f32.mxu0 %v900
    %1000 = vmatmul.mubr.f32.gmra.mxu0 %v899
    %v1001 = vpop.f32.mrf.mxu0
    %v1002 = vadd.f32 %v916, %v1001
    %v1003 = vpop.f32.mrf.mxu0
    %v1004 = vadd.f32 %v920, %v1003
    %1005 = vmatprep.mubr.f32.mxu0 %v902
    %1006 = vmatmul.mubr.f32.gmra.mxu0 %v901
    %v1007 = vpop.f32.mrf.mxu0
    %v1008 = vadd.f32 %v916, %v1007
    %v1009 = vpop.f32.mrf.mxu0
    %v1010 = vadd.f32 %v920, %v1009
    %1011 = vmatprep.mubr.f32.mxu0 %v904
    %1012 = vmatmul.mubr.f32.gmra.mxu0 %v903
    %v1013 = vpop.f32.mrf.mxu0
    %v1014 = vadd.f32 %v916, %v1013
    %v1015 = vpop.f32.mrf.mxu0
    %v1016 = vadd.f32 %v920, %v1015
    %1017 = vmatprep.mubr.f32.mxu0 %v906
    %1018 = vmatmul.mubr.f32.gmra.mxu0 %v905
    %v1019 = vpop.f32.mrf.mxu0
    %v1020 = vadd.f32 %v916, %v1019
    %v1021 = vpop.f32.mrf.mxu0
    %v1022 = vadd.f32 %v920, %v1021
    %1023 = vmatprep.mubr.f32.mxu0 %v908
    %1024 = vmatmul.mubr.f32.gmra.mxu0 %v907
    %v1025 = vpop.f32.mrf.mxu0
    %v1026 = vadd.f32 %v916, %v1025
    %v1027 = vpop.f32.mrf.mxu0
    %v1028 = vadd.f32 %v920, %v1027
    %1029 = vmatprep.mubr.f32.mxu0 %v910
    %1030 = vmatmul.mubr.f32.gmra.mxu0 %v909
    %v1031 = vpop.f32.mrf.mxu0
    %v1032 = vadd.f32 %v916, %v1031
    %v1033 = vpop.f32.mrf.mxu0
    %v1034 = vadd.f32 %v920, %v1033
    %1035 = vdwg.mxu0
    %v1036 = vmax.f32 %v990, 0.0
    %v1037 = vmax.f32 %v992, 0.0
    %v1038 = vmax.f32 %v996, 0.0
    %v1039 = vmax.f32 %v998, 0.0
    %v1040 = vmax.f32 %v1002, 0.0
    %v1041 = vmax.f32 %v1004, 0.0
    %v1042 = vmax.f32 %v1008, 0.0
    %v1043 = vmax.f32 %v1010, 0.0
    %v1044 = vmax.f32 %v1014, 0.0
    %v1045 = vmax.f32 %v1016, 0.0
    %v1046 = vmax.f32 %v1020, 0.0
    %v1047 = vmax.f32 %v1022, 0.0
    %v1048 = vmax.f32 %v1026, 0.0
    %v1049 = vmax.f32 %v1028, 0.0
    %v1050 = vmax.f32 %v1032, 0.0
    %v1051 = vmax.f32 %v1034, 0.0
    %v1052 = vld [vmem:[#allocation4 + $0x7] sm:$0x3]
    %v1053 = vld [vmem:[#allocation4 + $0x9] sm:$0x3]
    %v1054 = vadd.f32 %v1036, %v1038
    %v1055 = vadd.f32 %v1054, %v1040
    %v1056 = vadd.f32 %v1055, %v1042
    %v1057 = vadd.f32 %v1056, %v1044
    %v1058 = vadd.f32 %v1057, %v1046
    %v1059 = vadd.f32 %v1058, %v1048
    %v1060 = vadd.f32 %v1059, %v1050
    %v1061 = vrot.slane %v1060, 4
    %v1062 = vadd.f32 %v1060, %v1061
    %v1063 = vrot.slane %v1062, 2
    %v1064 = vadd.f32 %v1062, %v1063
    %v1065 = vrot.slane %v1064, 1
    %v1066 = vadd.f32 %v1064, %v1065
    %v1067 = vadd.f32 %v1037, %v1039
    %v1068 = vadd.f32 %v1067, %v1041
    %v1069 = vadd.f32 %v1068, %v1043
    %v1070 = vadd.f32 %v1069, %v1045
    %v1071 = vadd.f32 %v1070, %v1047
    %v1072 = vadd.f32 %v1071, %v1049
    %v1073 = vadd.f32 %v1072, %v1051
    %v1074 = vrot.slane %v1073, 4
    %v1075 = vadd.f32 %v1073, %v1074
    %v1076 = vrot.slane %v1075, 2
    %v1077 = vadd.f32 %v1075, %v1076
    %v1078 = vrot.slane %v1077, 1
    %v1079 = vadd.f32 %v1077, %v1078
    %v1080 = vmul.f32 %v1066, %v347
    %v1081 = vmul.f32 %v1079, %v347
    %v1082 = vsub.f32 %v1036, %v1080
    %v1083 = vsub.f32 %v1037, %v1081
    %v1084 = vsub.f32 %v1038, %v1080
    %v1085 = vsub.f32 %v1039, %v1081
    %v1086 = vsub.f32 %v1040, %v1080
    %v1087 = vsub.f32 %v1041, %v1081
    %v1088 = vsub.f32 %v1042, %v1080
    %v1089 = vsub.f32 %v1043, %v1081
    %v1090 = vsub.f32 %v1044, %v1080
    %v1091 = vsub.f32 %v1045, %v1081
    %v1092 = vsub.f32 %v1046, %v1080
    %v1093 = vsub.f32 %v1047, %v1081
    %v1094 = vsub.f32 %v1048, %v1080
    %v1095 = vsub.f32 %v1049, %v1081
    %v1096 = vsub.f32 %v1050, %v1080
    %v1097 = vsub.f32 %v1051, %v1081
    %v1098 = vmul.f32 %v1082, %v1082
    %v1099 = vmul.f32 %v1083, %v1083
    %v1100 = vmul.f32 %v1084, %v1084
    %v1101 = vmul.f32 %v1085, %v1085
    %v1102 = vmul.f32 %v1086, %v1086
    %v1103 = vmul.f32 %v1087, %v1087
    %v1104 = vmul.f32 %v1088, %v1088
    %v1105 = vmul.f32 %v1089, %v1089
    %v1106 = vmul.f32 %v1090, %v1090
    %v1107 = vmul.f32 %v1091, %v1091
    %v1108 = vmul.f32 %v1092, %v1092
    %v1109 = vmul.f32 %v1093, %v1093
    %v1110 = vmul.f32 %v1094, %v1094
    %v1111 = vmul.f32 %v1095, %v1095
    %v1112 = vmul.f32 %v1096, %v1096
    %v1113 = vmul.f32 %v1097, %v1097
    %v1114 = vadd.f32 %v1098, %v1100
    %v1115 = vadd.f32 %v1114, %v1102
    %v1116 = vadd.f32 %v1115, %v1104
    %v1117 = vadd.f32 %v1116, %v1106
    %v1118 = vadd.f32 %v1117, %v1108
    %v1119 = vadd.f32 %v1118, %v1110
    %v1120 = vadd.f32 %v1119, %v1112
    %v1121 = vrot.slane %v1120, 4
    %v1122 = vadd.f32 %v1120, %v1121
    %v1123 = vrot.slane %v1122, 2
    %v1124 = vadd.f32 %v1122, %v1123
    %v1125 = vrot.slane %v1124, 1
    %v1126 = vadd.f32 %v1124, %v1125
    %v1127 = vadd.f32 %v1099, %v1101
    %v1128 = vadd.f32 %v1127, %v1103
    %v1129 = vadd.f32 %v1128, %v1105
    %v1130 = vadd.f32 %v1129, %v1107
    %v1131 = vadd.f32 %v1130, %v1109
    %v1132 = vadd.f32 %v1131, %v1111
    %v1133 = vadd.f32 %v1132, %v1113
    %v1134 = vrot.slane %v1133, 4
    %v1135 = vadd.f32 %v1133, %v1134
    %v1136 = vrot.slane %v1135, 2
    %v1137 = vadd.f32 %v1135, %v1136
    %v1138 = vrot.slane %v1137, 1
    %v1139 = vadd.f32 %v1137, %v1138
    %v1140 = vmul.f32 %v1126, %v347
    %v1141 = vmul.f32 %v1139, %v347
    %v1142 = vadd.f32 %v1140, 1e-05
    %v1143 = vadd.f32 %v1141, 1e-05
    %v1144 = vrsqrt.pop %v1142
    %v1145 = vrsqrt.pop %v1143
    %v1148 = vcombine.low %v1144, %v1145
    %v1150 = vunpack.c.l.s4 1966171168
    %v1151 = vunpack.c.0.s8 %v1150
    %v1152 = vlaneseq
    %v1153 = vshrl.u32 %v1152, 7
    %v1154 = vsub.s32 %v1151, %v1153
    %v1155 = vrot.slane %v1148, %v1154
    %v1157 = vunpack.c.l.s4 1966171168
    %v1158 = vunpack.c.0.s8 %v1157
    %v1159 = vlaneseq
    %v1160 = vshrl.u32 %v1159, 7
    %v1161 = vsub.s32 %v1158, %v1160
    %v1162 = vrot.slane %v1155, %v1161
    %v1164 = vmul.f32 %v1052, %v1162
    %v1166 = vlaneseq
    %v1167 = vshrl.u32 %v1166, 7
    %v1168 = vsub.s32 0, %v1167
    %v1169 = vrot.slane %v1164, %v1168
    %v1170 = vlaneseq
    %v1171 = vshrl.u32 %v1170, 7
    %v1172 = vsub.s32 1, %v1171
    %v1173 = vrot.slane %v1164, %v1172
    %v1176 = vmul.f32 %v1082, %v1169
    %v1177 = vmul.f32 %v1083, %v1173
    %v1178 = vmul.f32 %v1084, %v1169
    %v1179 = vmul.f32 %v1085, %v1173
    %v1180 = vmul.f32 %v1086, %v1169
    %v1181 = vmul.f32 %v1087, %v1173
    %v1182 = vmul.f32 %v1088, %v1169
    %v1183 = vmul.f32 %v1089, %v1173
    %v1184 = vmul.f32 %v1090, %v1169
    %v1185 = vmul.f32 %v1091, %v1173
    %v1186 = vmul.f32 %v1092, %v1169
    %v1187 = vmul.f32 %v1093, %v1173
    %v1188 = vmul.f32 %v1094, %v1169
    %v1189 = vmul.f32 %v1095, %v1173
    %v1190 = vmul.f32 %v1096, %v1169
    %v1191 = vmul.f32 %v1097, %v1173
    %v1193 = vlaneseq
    %v1194 = vshrl.u32 %v1193, 7
    %v1195 = vsub.s32 0, %v1194
    %v1196 = vrot.slane %v1053, %v1195
    %v1197 = vlaneseq
    %v1198 = vshrl.u32 %v1197, 7
    %v1199 = vsub.s32 1, %v1198
    %v1200 = vrot.slane %v1053, %v1199
    %v1203 = vadd.f32 %v1176, %v1196
    %v1204 = vadd.f32 %v1177, %v1200
    %v1205 = vadd.f32 %v1178, %v1196
    %v1206 = vadd.f32 %v1179, %v1200
    %v1207 = vadd.f32 %v1180, %v1196
    %v1208 = vadd.f32 %v1181, %v1200
    %v1209 = vadd.f32 %v1182, %v1196
    %v1210 = vadd.f32 %v1183, %v1200
    %v1211 = vadd.f32 %v1184, %v1196
    %v1212 = vadd.f32 %v1185, %v1200
    %v1213 = vadd.f32 %v1186, %v1196
    %v1214 = vadd.f32 %v1187, %v1200
    %v1215 = vadd.f32 %v1188, %v1196
    %v1216 = vadd.f32 %v1189, %v1200
    %v1217 = vadd.f32 %v1190, %v1196
    %v1218 = vadd.f32 %v1191, %v1200
    %v1219 = vld [vmem:[#allocation6 + $0x1c0] sm:$0xff]
    %v1220 = vld [vmem:[#allocation6 + $0x1c8] sm:$0xff]
    %v1221 = vld [vmem:[#allocation6 + $0x1d0] sm:$0xff]
    %v1222 = vld [vmem:[#allocation6 + $0x1d8] sm:$0xff]
    %v1223 = vld [vmem:[#allocation6 + $0x1e0] sm:$0xff]
    %v1224 = vld [vmem:[#allocation6 + $0x1e8] sm:$0xff]
    %v1225 = vld [vmem:[#allocation6 + $0x1f0] sm:$0xff]
    %v1226 = vld [vmem:[#allocation6 + $0x1f8] sm:$0xff]
    %v1227 = vld [vmem:[#allocation6 + $0x200] sm:$0xff]
    %v1228 = vld [vmem:[#allocation6 + $0x208] sm:$0xff]
    %v1229 = vld [vmem:[#allocation6 + $0x210] sm:$0xff]
    %v1230 = vld [vmem:[#allocation6 + $0x218] sm:$0xff]
    %v1231 = vld [vmem:[#allocation6 + $0x220] sm:$0xff]
    %v1232 = vld [vmem:[#allocation6 + $0x228] sm:$0xff]
    %v1233 = vld [vmem:[#allocation6 + $0x230] sm:$0xff]
    %v1234 = vld [vmem:[#allocation6 + $0x238] sm:$0xff]
    %v1235 = vld [vmem:[#allocation6 + $0x240] sm:$0xff]
    %v1236 = vld [vmem:[#allocation6 + $0x248] sm:$0xff]
    %v1237 = vld [vmem:[#allocation6 + $0x250] sm:$0xff]
    %v1238 = vld [vmem:[#allocation6 + $0x258] sm:$0xff]
    %v1239 = vld [vmem:[#allocation6 + $0x260] sm:$0xff]
    %v1240 = vld [vmem:[#allocation6 + $0x268] sm:$0xff]
    %v1241 = vld [vmem:[#allocation6 + $0x270] sm:$0xff]
    %v1242 = vld [vmem:[#allocation6 + $0x278] sm:$0xff]
    %v1243 = vld [vmem:[#allocation6 + $0x280] sm:$0xff]
    %v1244 = vld [vmem:[#allocation6 + $0x288] sm:$0xff]
    %v1245 = vld [vmem:[#allocation6 + $0x290] sm:$0xff]
    %v1246 = vld [vmem:[#allocation6 + $0x298] sm:$0xff]
    %v1247 = vld [vmem:[#allocation6 + $0x2a0] sm:$0xff]
    %v1248 = vld [vmem:[#allocation6 + $0x2a8] sm:$0xff]
    %v1249 = vld [vmem:[#allocation6 + $0x2b0] sm:$0xff]
    %v1250 = vld [vmem:[#allocation6 + $0x2b8] sm:$0xff]
    %v1251 = vld [vmem:[#allocation4 + $0xb] sm:$0x1]
    %v1253 = vlaneseq
    %v1254 = vshrl.u32 %v1253, 7
    %v1255 = vsub.s32 0, %v1254
    %v1256 = vrot.slane %v1251, %v1255
    %1258 = vmatprep.subr.mxu0 0.0
    %1259 = vmatpush1.msra.mxu0 %v1234
    %1260 = vmatprep.subr.mxu0 0.0
    %1261 = vmatpush1.msra.mxu0 %v1233
    %1262 = vmatprep.subr.mxu0 0.0
    %1263 = vmatpush1.msra.mxu0 %v1232
    %1264 = vmatprep.subr.mxu0 0.0
    %1265 = vmatpush1.msra.mxu0 %v1231
    %1266 = vmatprep.subr.mxu0 0.0
    %1267 = vmatpush1.msra.mxu0 %v1230
    %1268 = vmatprep.subr.mxu0 0.0
    %1269 = vmatpush1.msra.mxu0 %v1229
    %1270 = vmatprep.subr.mxu0 0.0
    %1271 = vmatpush1.msra.mxu0 %v1228
    %1272 = vmatprep.subr.mxu0 0.0
    %1273 = vmatpush1.msra.mxu0 %v1227
    %1274 = vmatprep.subr.mxu0 0.0
    %1275 = vmatpush1.msra.mxu0 %v1226
    %1276 = vmatprep.subr.mxu0 0.0
    %1277 = vmatpush1.msra.mxu0 %v1225
    %1278 = vmatprep.subr.mxu0 0.0
    %1279 = vmatpush1.msra.mxu0 %v1224
    %1280 = vmatprep.subr.mxu0 0.0
    %1281 = vmatpush1.msra.mxu0 %v1223
    %1282 = vmatprep.subr.mxu0 0.0
    %1283 = vmatpush1.msra.mxu0 %v1222
    %1284 = vmatprep.subr.mxu0 0.0
    %1285 = vmatpush1.msra.mxu0 %v1221
    %1286 = vmatprep.subr.mxu0 0.0
    %1287 = vmatpush1.msra.mxu0 %v1220
    %1288 = vmatprep.subr.mxu0 0.0
    %1289 = vmatpush1.msra.mxu0 %v1219
    %1290 = vmatprep.subr.mxu0 0.0
    %1291 = vmatpush2.msra.mxu0 %v1250
    %1292 = vmatprep.subr.mxu0 0.0
    %1293 = vmatpush2.msra.mxu0 %v1249
    %1294 = vmatprep.subr.mxu0 0.0
    %1295 = vmatpush2.msra.mxu0 %v1248
    %1296 = vmatprep.subr.mxu0 0.0
    %1297 = vmatpush2.msra.mxu0 %v1247
    %1298 = vmatprep.subr.mxu0 0.0
    %1299 = vmatpush2.msra.mxu0 %v1246
    %1300 = vmatprep.subr.mxu0 0.0
    %1301 = vmatpush2.msra.mxu0 %v1245
    %1302 = vmatprep.subr.mxu0 0.0
    %1303 = vmatpush2.msra.mxu0 %v1244
    %1304 = vmatprep.subr.mxu0 0.0
    %1305 = vmatpush2.msra.mxu0 %v1243
    %1306 = vmatprep.subr.mxu0 0.0
    %1307 = vmatpush2.msra.mxu0 %v1242
    %1308 = vmatprep.subr.mxu0 0.0
    %1309 = vmatpush2.msra.mxu0 %v1241
    %1310 = vmatprep.subr.mxu0 0.0
    %1311 = vmatpush2.msra.mxu0 %v1240
    %1312 = vmatprep.subr.mxu0 0.0
    %1313 = vmatpush2.msra.mxu0 %v1239
    %1314 = vmatprep.subr.mxu0 0.0
    %1315 = vmatpush2.msra.mxu0 %v1238
    %1316 = vmatprep.subr.mxu0 0.0
    %1317 = vmatpush2.msra.mxu0 %v1237
    %1318 = vmatprep.subr.mxu0 0.0
    %1319 = vmatpush2.msra.mxu0 %v1236
    %1320 = vmatprep.subr.mxu0 0.0
    %1321 = vmatpush2.msra.mxu0 %v1235
    %1322 = vmatprep.mubr.f32.mxu0 %v1204
    %1323 = vmatmul.mubr.f32.gmra.mxu0 %v1203
    %v1324 = vpop.f32.mrf.mxu0
    %v1325 = vadd.f32 %v1256, %v1324
    %v1326 = vpop.f32.mrf.mxu0
    %1327 = vmatprep.mubr.f32.mxu0 %v1206
    %1328 = vmatmul.mubr.f32.gmra.mxu0 %v1205
    %v1329 = vpop.f32.mrf.mxu0
    %v1330 = vadd.f32 %v1256, %v1329
    %v1331 = vpop.f32.mrf.mxu0
    %1332 = vmatprep.mubr.f32.mxu0 %v1208
    %1333 = vmatmul.mubr.f32.gmra.mxu0 %v1207
    %v1334 = vpop.f32.mrf.mxu0
    %v1335 = vadd.f32 %v1256, %v1334
    %v1336 = vpop.f32.mrf.mxu0
    %1337 = vmatprep.mubr.f32.mxu0 %v1210
    %1338 = vmatmul.mubr.f32.gmra.mxu0 %v1209
    %v1339 = vpop.f32.mrf.mxu0
    %v1340 = vadd.f32 %v1256, %v1339
    %v1341 = vpop.f32.mrf.mxu0
    %1342 = vmatprep.mubr.f32.mxu0 %v1212
    %1343 = vmatmul.mubr.f32.gmra.mxu0 %v1211
    %v1344 = vpop.f32.mrf.mxu0
    %v1345 = vadd.f32 %v1256, %v1344
    %v1346 = vpop.f32.mrf.mxu0
    %1347 = vmatprep.mubr.f32.mxu0 %v1214
    %1348 = vmatmul.mubr.f32.gmra.mxu0 %v1213
    %v1349 = vpop.f32.mrf.mxu0
    %v1350 = vadd.f32 %v1256, %v1349
    %v1351 = vpop.f32.mrf.mxu0
    %1352 = vmatprep.mubr.f32.mxu0 %v1216
    %1353 = vmatmul.mubr.f32.gmra.mxu0 %v1215
    %v1354 = vpop.f32.mrf.mxu0
    %v1355 = vadd.f32 %v1256, %v1354
    %v1356 = vpop.f32.mrf.mxu0
    %1357 = vmatprep.mubr.f32.mxu0 %v1218
    %1358 = vmatmul.mubr.f32.gmra.mxu0 %v1217
    %v1359 = vpop.f32.mrf.mxu0
    %v1360 = vadd.f32 %v1256, %v1359
    %v1361 = vpop.f32.mrf.mxu0
    %1362 = vdwg.mxu0
    %v1363 = vmax.f32 %v1325, 0.0
    %v1364 = vmax.f32 %v1330, 0.0
    %v1365 = vmax.f32 %v1335, 0.0
    %v1366 = vmax.f32 %v1340, 0.0
    %v1367 = vmax.f32 %v1345, 0.0
    %v1368 = vmax.f32 %v1350, 0.0
    %v1369 = vmax.f32 %v1355, 0.0
    %v1370 = vmax.f32 %v1360, 0.0
    %v1371 = vld [vmem:[#allocation6 + $0x2c0] sm:$0xff]
    %v1372 = vld [vmem:[#allocation6 + $0x2c8] sm:$0xff]
    %v1373 = vld [vmem:[#allocation6 + $0x2d0] sm:$0xff]
    %v1374 = vld [vmem:[#allocation6 + $0x2d8] sm:$0xff]
    %v1375 = vld [vmem:[#allocation6 + $0x2e0] sm:$0xff]
    %v1376 = vld [vmem:[#allocation6 + $0x2e8] sm:$0xff]
    %v1377 = vld [vmem:[#allocation6 + $0x2f0] sm:$0xff]
    %v1378 = vld [vmem:[#allocation6 + $0x2f8] sm:$0xff]
    %v1379 = vld [vmem:[#allocation6 + $0x300] sm:$0xff]
    %v1380 = vld [vmem:[#allocation6 + $0x308] sm:$0xff]
    %v1381 = vld [vmem:[#allocation6 + $0x310] sm:$0xff]
    %v1382 = vld [vmem:[#allocation6 + $0x318] sm:$0xff]
    %v1383 = vld [vmem:[#allocation6 + $0x320] sm:$0xff]
    %v1384 = vld [vmem:[#allocation6 + $0x328] sm:$0xff]
    %v1385 = vld [vmem:[#allocation6 + $0x330] sm:$0xff]
    %v1386 = vld [vmem:[#allocation6 + $0x338] sm:$0xff]
    %v1387 = vld [vmem:[#allocation4 + $0xc] sm:$0x1]
    %v1389 = vlaneseq
    %v1390 = vshrl.u32 %v1389, 7
    %v1391 = vsub.s32 0, %v1390
    %v1392 = vrot.slane %v1387, %v1391
    %1394 = vmatprep.subr.mxu0 0.0
    %1395 = vmatpush1.msra.mxu0 %v1386
    %1396 = vmatprep.subr.mxu0 0.0
    %1397 = vmatpush1.msra.mxu0 %v1385
    %1398 = vmatprep.subr.mxu0 0.0
    %1399 = vmatpush1.msra.mxu0 %v1384
    %1400 = vmatprep.subr.mxu0 0.0
    %1401 = vmatpush1.msra.mxu0 %v1383
    %1402 = vmatprep.subr.mxu0 0.0
    %1403 = vmatpush1.msra.mxu0 %v1382
    %1404 = vmatprep.subr.mxu0 0.0
    %1405 = vmatpush1.msra.mxu0 %v1381
    %1406 = vmatprep.subr.mxu0 0.0
    %1407 = vmatpush1.msra.mxu0 %v1380
    %1408 = vmatprep.subr.mxu0 0.0
    %1409 = vmatpush1.msra.mxu0 %v1379
    %1410 = vmatprep.subr.mxu0 0.0
    %1411 = vmatpush1.msra.mxu0 %v1378
    %1412 = vmatprep.subr.mxu0 0.0
    %1413 = vmatpush1.msra.mxu0 %v1377
    %1414 = vmatprep.subr.mxu0 0.0
    %1415 = vmatpush1.msra.mxu0 %v1376
    %1416 = vmatprep.subr.mxu0 0.0
    %1417 = vmatpush1.msra.mxu0 %v1375
    %1418 = vmatprep.subr.mxu0 0.0
    %1419 = vmatpush1.msra.mxu0 %v1374
    %1420 = vmatprep.subr.mxu0 0.0
    %1421 = vmatpush1.msra.mxu0 %v1373
    %1422 = vmatprep.subr.mxu0 0.0
    %1423 = vmatpush1.msra.mxu0 %v1372
    %1424 = vmatprep.subr.mxu0 0.0
    %1425 = vmatpush1.msra.mxu0 %v1371
    %1426 = vmatprep.subr.mxu0 0.0
    %1427 = vmatpush2.msra.mxu0 0.0
    %1428 = vmatprep.subr.mxu0 0.0
    %1429 = vmatpush2.msra.mxu0 0.0
    %1430 = vmatprep.subr.mxu0 0.0
    %1431 = vmatpush2.msra.mxu0 0.0
    %1432 = vmatprep.subr.mxu0 0.0
    %1433 = vmatpush2.msra.mxu0 0.0
    %1434 = vmatprep.subr.mxu0 0.0
    %1435 = vmatpush2.msra.mxu0 0.0
    %1436 = vmatprep.subr.mxu0 0.0
    %1437 = vmatpush2.msra.mxu0 0.0
    %1438 = vmatprep.subr.mxu0 0.0
    %1439 = vmatpush2.msra.mxu0 0.0
    %1440 = vmatprep.subr.mxu0 0.0
    %1441 = vmatpush2.msra.mxu0 0.0
    %1442 = vmatprep.subr.mxu0 0.0
    %1443 = vmatpush2.msra.mxu0 0.0
    %1444 = vmatprep.subr.mxu0 0.0
    %1445 = vmatpush2.msra.mxu0 0.0
    %1446 = vmatprep.subr.mxu0 0.0
    %1447 = vmatpush2.msra.mxu0 0.0
    %1448 = vmatprep.subr.mxu0 0.0
    %1449 = vmatpush2.msra.mxu0 0.0
    %1450 = vmatprep.subr.mxu0 0.0
    %1451 = vmatpush2.msra.mxu0 0.0
    %1452 = vmatprep.subr.mxu0 0.0
    %1453 = vmatpush2.msra.mxu0 0.0
    %1454 = vmatprep.subr.mxu0 0.0
    %1455 = vmatpush2.msra.mxu0 0.0
    %1456 = vmatprep.subr.mxu0 0.0
    %1457 = vmatpush2.msra.mxu0 0.0
    %1458 = vmatprep.mubr.f32.mxu0 0.0
    %1459 = vmatmul.mubr.f32.gmra.mxu0 %v1363
    %v1460 = vpop.f32.mrf.mxu0
    %v1461 = vadd.f32 %v1392, %v1460
    %v1462 = vpop.f32.mrf.mxu0
    %1463 = vmatprep.mubr.f32.mxu0 0.0
    %1464 = vmatmul.mubr.f32.gmra.mxu0 %v1364
    %v1465 = vpop.f32.mrf.mxu0
    %v1466 = vadd.f32 %v1392, %v1465
    %v1467 = vpop.f32.mrf.mxu0
    %1468 = vmatprep.mubr.f32.mxu0 0.0
    %1469 = vmatmul.mubr.f32.gmra.mxu0 %v1365
    %v1470 = vpop.f32.mrf.mxu0
    %v1471 = vadd.f32 %v1392, %v1470
    %v1472 = vpop.f32.mrf.mxu0
    %1473 = vmatprep.mubr.f32.mxu0 0.0
    %1474 = vmatmul.mubr.f32.gmra.mxu0 %v1366
    %v1475 = vpop.f32.mrf.mxu0
    %v1476 = vadd.f32 %v1392, %v1475
    %v1477 = vpop.f32.mrf.mxu0
    %1478 = vmatprep.mubr.f32.mxu0 0.0
    %1479 = vmatmul.mubr.f32.gmra.mxu0 %v1367
    %v1480 = vpop.f32.mrf.mxu0
    %v1481 = vadd.f32 %v1392, %v1480
    %v1482 = vpop.f32.mrf.mxu0
    %1483 = vmatprep.mubr.f32.mxu0 0.0
    %1484 = vmatmul.mubr.f32.gmra.mxu0 %v1368
    %v1485 = vpop.f32.mrf.mxu0
    %v1486 = vadd.f32 %v1392, %v1485
    %v1487 = vpop.f32.mrf.mxu0
    %1488 = vmatprep.mubr.f32.mxu0 0.0
    %1489 = vmatmul.mubr.f32.gmra.mxu0 %v1369
    %v1490 = vpop.f32.mrf.mxu0
    %v1491 = vadd.f32 %v1392, %v1490
    %v1492 = vpop.f32.mrf.mxu0
    %1493 = vmatprep.mubr.f32.mxu0 0.0
    %1494 = vmatmul.mubr.f32.gmra.mxu0 %v1370
    %v1495 = vpop.f32.mrf.mxu0
    %v1496 = vadd.f32 %v1392, %v1495
    %v1497 = vpop.f32.mrf.mxu0
    %1498 = vdwg.mxu0
    %v1499 = vld [vmem:[#allocation4 + $0xd] sm:$0x1]
    %v1500 = vld [vmem:[#allocation4 + $0x10] sm:$0x1]
    %v1501 = vadd.f32 %v753, %v758
    %v1502 = vadd.f32 %v1501, %v763
    %v1503 = vadd.f32 %v1502, %v768
    %v1504 = vadd.f32 %v1503, %v773
    %v1505 = vadd.f32 %v1504, %v778
    %v1506 = vadd.f32 %v1505, %v783
    %v1507 = vadd.f32 %v1506, %v788
    %v1508 = vrot.slane %v1507, 4
    %v1509 = vadd.f32 %v1507, %v1508
    %v1510 = vrot.slane %v1509, 2
    %v1511 = vadd.f32 %v1509, %v1510
    %v1512 = vrot.slane %v1511, 1
    %v1513 = vadd.f32 %v1511, %v1512
    %v1514 = vmul.f32 %v1513, %v347
    %v1515 = vsub.f32 %v753, %v1514
    %v1516 = vsub.f32 %v758, %v1514
    %v1517 = vsub.f32 %v763, %v1514
    %v1518 = vsub.f32 %v768, %v1514
    %v1519 = vsub.f32 %v773, %v1514
    %v1520 = vsub.f32 %v778, %v1514
    %v1521 = vsub.f32 %v783, %v1514
    %v1522 = vsub.f32 %v788, %v1514
    %v1523 = vmul.f32 %v1515, %v1515
    %v1524 = vmul.f32 %v1516, %v1516
    %v1525 = vmul.f32 %v1517, %v1517
    %v1526 = vmul.f32 %v1518, %v1518
    %v1527 = vmul.f32 %v1519, %v1519
    %v1528 = vmul.f32 %v1520, %v1520
    %v1529 = vmul.f32 %v1521, %v1521
    %v1530 = vmul.f32 %v1522, %v1522
    %v1531 = vadd.f32 %v1523, %v1524
    %v1532 = vadd.f32 %v1531, %v1525
    %v1533 = vadd.f32 %v1532, %v1526
    %v1534 = vadd.f32 %v1533, %v1527
    %v1535 = vadd.f32 %v1534, %v1528
    %v1536 = vadd.f32 %v1535, %v1529
    %v1537 = vadd.f32 %v1536, %v1530
    %v1538 = vrot.slane %v1537, 4
    %v1539 = vadd.f32 %v1537, %v1538
    %v1540 = vrot.slane %v1539, 2
    %v1541 = vadd.f32 %v1539, %v1540
    %v1542 = vrot.slane %v1541, 1
    %v1543 = vadd.f32 %v1541, %v1542
    %v1544 = vmul.f32 %v1543, %v347
    %v1545 = vadd.f32 %v1544, 1e-05
    %v1546 = vrsqrt.pop %v1545
    %v1547 = vmul.f32 %v1499, %v1546
    %v1549 = vlaneseq
    %v1550 = vshrl.u32 %v1549, 7
    %v1551 = vsub.s32 0, %v1550
    %v1552 = vrot.slane %v1547, %v1551
    %v1554 = vmul.f32 %v1515, %v1552
    %v1555 = vmul.f32 %v1516, %v1552
    %v1556 = vmul.f32 %v1517, %v1552
    %v1557 = vmul.f32 %v1518, %v1552
    %v1558 = vmul.f32 %v1519, %v1552
    %v1559 = vmul.f32 %v1520, %v1552
    %v1560 = vmul.f32 %v1521, %v1552
    %v1561 = vmul.f32 %v1522, %v1552
    %v1563 = vlaneseq
    %v1564 = vshrl.u32 %v1563, 7
    %v1565 = vsub.s32 0, %v1564
    %v1566 = vrot.slane %v1500, %v1565
    %v1568 = vadd.f32 %v1554, %v1566
    %v1569 = vadd.f32 %v1555, %v1566
    %v1570 = vadd.f32 %v1556, %v1566
    %v1571 = vadd.f32 %v1557, %v1566
    %v1572 = vadd.f32 %v1558, %v1566
    %v1573 = vadd.f32 %v1559, %v1566
    %v1574 = vadd.f32 %v1560, %v1566
    %v1575 = vadd.f32 %v1561, %v1566
    %v1576 = vld [vmem:[#allocation4 + $0xe] sm:$0x1]
    %v1577 = vld [vmem:[#allocation4 + $0x11] sm:$0x1]
    %v1578 = vadd.f32 %v793, %v798
    %v1579 = vadd.f32 %v1578, %v803
    %v1580 = vadd.f32 %v1579, %v808
    %v1581 = vadd.f32 %v1580, %v813
    %v1582 = vadd.f32 %v1581, %v818
    %v1583 = vadd.f32 %v1582, %v823
    %v1584 = vadd.f32 %v1583, %v828
    %v1585 = vrot.slane %v1584, 4
    %v1586 = vadd.f32 %v1584, %v1585
    %v1587 = vrot.slane %v1586, 2
    %v1588 = vadd.f32 %v1586, %v1587
    %v1589 = vrot.slane %v1588, 1
    %v1590 = vadd.f32 %v1588, %v1589
    %v1591 = vmul.f32 %v1590, %v347
    %v1592 = vsub.f32 %v793, %v1591
    %v1593 = vsub.f32 %v798, %v1591
    %v1594 = vsub.f32 %v803, %v1591
    %v1595 = vsub.f32 %v808, %v1591
    %v1596 = vsub.f32 %v813, %v1591
    %v1597 = vsub.f32 %v818, %v1591
    %v1598 = vsub.f32 %v823, %v1591
    %v1599 = vsub.f32 %v828, %v1591
    %v1600 = vmul.f32 %v1592, %v1592
    %v1601 = vmul.f32 %v1593, %v1593
    %v1602 = vmul.f32 %v1594, %v1594
    %v1603 = vmul.f32 %v1595, %v1595
    %v1604 = vmul.f32 %v1596, %v1596
    %v1605 = vmul.f32 %v1597, %v1597
    %v1606 = vmul.f32 %v1598, %v1598
    %v1607 = vmul.f32 %v1599, %v1599
    %v1608 = vadd.f32 %v1600, %v1601
    %v1609 = vadd.f32 %v1608, %v1602
    %v1610 = vadd.f32 %v1609, %v1603
    %v1611 = vadd.f32 %v1610, %v1604
    %v1612 = vadd.f32 %v1611, %v1605
    %v1613 = vadd.f32 %v1612, %v1606
    %v1614 = vadd.f32 %v1613, %v1607
    %v1615 = vrot.slane %v1614, 4
    %v1616 = vadd.f32 %v1614, %v1615
    %v1617 = vrot.slane %v1616, 2
    %v1618 = vadd.f32 %v1616, %v1617
    %v1619 = vrot.slane %v1618, 1
    %v1620 = vadd.f32 %v1618, %v1619
    %v1621 = vmul.f32 %v1620, %v347
    %v1622 = vadd.f32 %v1621, 1e-05
    %v1623 = vrsqrt.pop %v1622
    %v1624 = vmul.f32 %v1576, %v1623
    %v1626 = vlaneseq
    %v1627 = vshrl.u32 %v1626, 7
    %v1628 = vsub.s32 0, %v1627
    %v1629 = vrot.slane %v1624, %v1628
    %v1631 = vmul.f32 %v1592, %v1629
    %v1632 = vmul.f32 %v1593, %v1629
    %v1633 = vmul.f32 %v1594, %v1629
    %v1634 = vmul.f32 %v1595, %v1629
    %v1635 = vmul.f32 %v1596, %v1629
    %v1636 = vmul.f32 %v1597, %v1629
    %v1637 = vmul.f32 %v1598, %v1629
    %v1638 = vmul.f32 %v1599, %v1629
    %v1640 = vlaneseq
    %v1641 = vshrl.u32 %v1640, 7
    %v1642 = vsub.s32 0, %v1641
    %v1643 = vrot.slane %v1577, %v1642
    %v1645 = vadd.f32 %v1631, %v1643
    %v1646 = vadd.f32 %v1632, %v1643
    %v1647 = vadd.f32 %v1633, %v1643
    %v1648 = vadd.f32 %v1634, %v1643
    %v1649 = vadd.f32 %v1635, %v1643
    %v1650 = vadd.f32 %v1636, %v1643
    %v1651 = vadd.f32 %v1637, %v1643
    %v1652 = vadd.f32 %v1638, %v1643
    %v1653 = vld [vmem:[#allocation4 + $0xf] sm:$0x1]
    %v1654 = vld [vmem:[#allocation4 + $0x12] sm:$0x1]
    %v1655 = vadd.f32 %v1461, %v1466
    %v1656 = vadd.f32 %v1655, %v1471
    %v1657 = vadd.f32 %v1656, %v1476
    %v1658 = vadd.f32 %v1657, %v1481
    %v1659 = vadd.f32 %v1658, %v1486
    %v1660 = vadd.f32 %v1659, %v1491
    %v1661 = vadd.f32 %v1660, %v1496
    %v1662 = vrot.slane %v1661, 4
    %v1663 = vadd.f32 %v1661, %v1662
    %v1664 = vrot.slane %v1663, 2
    %v1665 = vadd.f32 %v1663, %v1664
    %v1666 = vrot.slane %v1665, 1
    %v1667 = vadd.f32 %v1665, %v1666
    %v1668 = vmul.f32 %v1667, %v347
    %v1669 = vsub.f32 %v1461, %v1668
    %v1670 = vsub.f32 %v1466, %v1668
    %v1671 = vsub.f32 %v1471, %v1668
    %v1672 = vsub.f32 %v1476, %v1668
    %v1673 = vsub.f32 %v1481, %v1668
    %v1674 = vsub.f32 %v1486, %v1668
    %v1675 = vsub.f32 %v1491, %v1668
    %v1676 = vsub.f32 %v1496, %v1668
    %v1677 = vmul.f32 %v1669, %v1669
    %v1678 = vmul.f32 %v1670, %v1670
    %v1679 = vmul.f32 %v1671, %v1671
    %v1680 = vmul.f32 %v1672, %v1672
    %v1681 = vmul.f32 %v1673, %v1673
    %v1682 = vmul.f32 %v1674, %v1674
    %v1683 = vmul.f32 %v1675, %v1675
    %v1684 = vmul.f32 %v1676, %v1676
    %v1685 = vadd.f32 %v1677, %v1678
    %v1686 = vadd.f32 %v1685, %v1679
    %v1687 = vadd.f32 %v1686, %v1680
    %v1688 = vadd.f32 %v1687, %v1681
    %v1689 = vadd.f32 %v1688, %v1682
    %v1690 = vadd.f32 %v1689, %v1683
    %v1691 = vadd.f32 %v1690, %v1684
    %v1692 = vrot.slane %v1691, 4
    %v1693 = vadd.f32 %v1691, %v1692
    %v1694 = vrot.slane %v1693, 2
    %v1695 = vadd.f32 %v1693, %v1694
    %v1696 = vrot.slane %v1695, 1
    %v1697 = vadd.f32 %v1695, %v1696
    %v1698 = vmul.f32 %v1697, %v347
    %v1699 = vadd.f32 %v1698, 1e-05
    %v1700 = vrsqrt.pop %v1699
    %v1701 = vmul.f32 %v1653, %v1700
    %v1703 = vlaneseq
    %v1704 = vshrl.u32 %v1703, 7
    %v1705 = vsub.s32 0, %v1704
    %v1706 = vrot.slane %v1701, %v1705
    %v1708 = vmul.f32 %v1669, %v1706
    %v1709 = vmul.f32 %v1670, %v1706
    %v1710 = vmul.f32 %v1671, %v1706
    %v1711 = vmul.f32 %v1672, %v1706
    %v1712 = vmul.f32 %v1673, %v1706
    %v1713 = vmul.f32 %v1674, %v1706
    %v1714 = vmul.f32 %v1675, %v1706
    %v1715 = vmul.f32 %v1676, %v1706
    %v1717 = vlaneseq
    %v1718 = vshrl.u32 %v1717, 7
    %v1719 = vsub.s32 0, %v1718
    %v1720 = vrot.slane %v1654, %v1719
    %v1722 = vadd.f32 %v1708, %v1720
    %v1723 = vadd.f32 %v1709, %v1720
    %v1724 = vadd.f32 %v1710, %v1720
    %v1725 = vadd.f32 %v1711, %v1720
    %v1726 = vadd.f32 %v1712, %v1720
    %v1727 = vadd.f32 %v1713, %v1720
    %v1728 = vadd.f32 %v1714, %v1720
    %v1729 = vadd.f32 %v1715, %v1720
    %v1730 = vld [vmem:[#allocation6 + $0x340] sm:$0xff]
    %v1731 = vld [vmem:[#allocation6 + $0x348] sm:$0xff]
    %v1732 = vld [vmem:[#allocation6 + $0x350] sm:$0xff]
    %v1733 = vld [vmem:[#allocation6 + $0x358] sm:$0xff]
    %v1734 = vld [vmem:[#allocation6 + $0x360] sm:$0xff]
    %v1735 = vld [vmem:[#allocation6 + $0x368] sm:$0xff]
    %v1736 = vld [vmem:[#allocation6 + $0x370] sm:$0xff]
    %v1737 = vld [vmem:[#allocation6 + $0x378] sm:$0xff]
    %v1738 = vld [vmem:[#allocation6 + $0x380] sm:$0xff]
    %v1739 = vld [vmem:[#allocation6 + $0x388] sm:$0xff]
    %v1740 = vld [vmem:[#allocation6 + $0x390] sm:$0xff]
    %v1741 = vld [vmem:[#allocation6 + $0x398] sm:$0xff]
    %v1742 = vld [vmem:[#allocation6 + $0x3a0] sm:$0xff]
    %v1743 = vld [vmem:[#allocation6 + $0x3a8] sm:$0xff]
    %v1744 = vld [vmem:[#allocation6 + $0x3b0] sm:$0xff]
    %v1745 = vld [vmem:[#allocation6 + $0x3b8] sm:$0xff]
    %v1746 = vld [vmem:[#allocation6 + $0x3c0] sm:$0xff]
    %v1747 = vld [vmem:[#allocation6 + $0x3c8] sm:$0xff]
    %v1748 = vld [vmem:[#allocation6 + $0x3d0] sm:$0xff]
    %v1749 = vld [vmem:[#allocation6 + $0x3d8] sm:$0xff]
    %v1750 = vld [vmem:[#allocation6 + $0x3e0] sm:$0xff]
    %v1751 = vld [vmem:[#allocation6 + $0x3e8] sm:$0xff]
    %v1752 = vld [vmem:[#allocation6 + $0x3f0] sm:$0xff]
    %v1753 = vld [vmem:[#allocation6 + $0x3f8] sm:$0xff]
    %v1754 = vld [vmem:[#allocation6 + $0x400] sm:$0xff]
    %v1755 = vld [vmem:[#allocation6 + $0x408] sm:$0xff]
    %v1756 = vld [vmem:[#allocation6 + $0x410] sm:$0xff]
    %v1757 = vld [vmem:[#allocation6 + $0x418] sm:$0xff]
    %v1758 = vld [vmem:[#allocation6 + $0x420] sm:$0xff]
    %v1759 = vld [vmem:[#allocation6 + $0x428] sm:$0xff]
    %v1760 = vld [vmem:[#allocation6 + $0x430] sm:$0xff]
    %v1761 = vld [vmem:[#allocation6 + $0x438] sm:$0xff]
    %1762 = vmatprep.subr.mxu0 0.0
    %1763 = vmatpush1.msra.mxu0 %v1761
    %1764 = vmatprep.subr.mxu0 0.0
    %1765 = vmatpush1.msra.mxu0 %v1760
    %1766 = vmatprep.subr.mxu0 0.0
    %1767 = vmatpush1.msra.mxu0 %v1759
    %1768 = vmatprep.subr.mxu0 0.0
    %1769 = vmatpush1.msra.mxu0 %v1758
    %1770 = vmatprep.subr.mxu0 0.0
    %1771 = vmatpush1.msra.mxu0 %v1757
    %1772 = vmatprep.subr.mxu0 0.0
    %1773 = vmatpush1.msra.mxu0 %v1756
    %1774 = vmatprep.subr.mxu0 0.0
    %1775 = vmatpush1.msra.mxu0 %v1755
    %1776 = vmatprep.subr.mxu0 0.0
    %1777 = vmatpush1.msra.mxu0 %v1754
    %1778 = vmatprep.subr.mxu0 0.0
    %1779 = vmatpush1.msra.mxu0 %v1753
    %1780 = vmatprep.subr.mxu0 0.0
    %1781 = vmatpush1.msra.mxu0 %v1752
    %1782 = vmatprep.subr.mxu0 0.0
    %1783 = vmatpush1.msra.mxu0 %v1751
    %1784 = vmatprep.subr.mxu0 0.0
    %1785 = vmatpush1.msra.mxu0 %v1750
    %1786 = vmatprep.subr.mxu0 0.0
    %1787 = vmatpush1.msra.mxu0 %v1749
    %1788 = vmatprep.subr.mxu0 0.0
    %1789 = vmatpush1.msra.mxu0 %v1748
    %1790 = vmatprep.subr.mxu0 0.0
    %1791 = vmatpush1.msra.mxu0 %v1747
    %1792 = vmatprep.subr.mxu0 0.0
    %1793 = vmatpush1.msra.mxu0 %v1746
    %1794 = vmatprep.subr.mxu0 0.0
    %1795 = vmatpush2.msra.mxu0 0.0
    %1796 = vmatprep.subr.mxu0 0.0
    %1797 = vmatpush2.msra.mxu0 0.0
    %1798 = vmatprep.subr.mxu0 0.0
    %1799 = vmatpush2.msra.mxu0 0.0
    %1800 = vmatprep.subr.mxu0 0.0
    %1801 = vmatpush2.msra.mxu0 0.0
    %1802 = vmatprep.subr.mxu0 0.0
    %1803 = vmatpush2.msra.mxu0 0.0
    %1804 = vmatprep.subr.mxu0 0.0
    %1805 = vmatpush2.msra.mxu0 0.0
    %1806 = vmatprep.subr.mxu0 0.0
    %1807 = vmatpush2.msra.mxu0 0.0
    %1808 = vmatprep.subr.mxu0 0.0
    %1809 = vmatpush2.msra.mxu0 0.0
    %1810 = vmatprep.subr.mxu0 0.0
    %1811 = vmatpush2.msra.mxu0 0.0
    %1812 = vmatprep.subr.mxu0 0.0
    %1813 = vmatpush2.msra.mxu0 0.0
    %1814 = vmatprep.subr.mxu0 0.0
    %1815 = vmatpush2.msra.mxu0 0.0
    %1816 = vmatprep.subr.mxu0 0.0
    %1817 = vmatpush2.msra.mxu0 0.0
    %1818 = vmatprep.subr.mxu0 0.0
    %1819 = vmatpush2.msra.mxu0 0.0
    %1820 = vmatprep.subr.mxu0 0.0
    %1821 = vmatpush2.msra.mxu0 0.0
    %1822 = vmatprep.subr.mxu0 0.0
    %1823 = vmatpush2.msra.mxu0 0.0
    %1824 = vmatprep.subr.mxu0 0.0
    %1825 = vmatpush2.msra.mxu0 0.0
    %1826 = vmatprep.mubr.f32.mxu0 0.0
    %1827 = vmatmul.mubr.f32.gmra.mxu0 %v1645
    %v1828 = vpop.f32.mrf.mxu0
    %v1829 = vadd.f32 0.0, %v1828
    %v1830 = vpop.f32.mrf.mxu0
    %1831 = vmatprep.mubr.f32.mxu0 0.0
    %1832 = vmatmul.mubr.f32.gmra.mxu0 %v1646
    %v1833 = vpop.f32.mrf.mxu0
    %v1834 = vadd.f32 0.0, %v1833
    %v1835 = vpop.f32.mrf.mxu0
    %1836 = vmatprep.mubr.f32.mxu0 0.0
    %1837 = vmatmul.mubr.f32.gmra.mxu0 %v1647
    %v1838 = vpop.f32.mrf.mxu0
    %v1839 = vadd.f32 0.0, %v1838
    %v1840 = vpop.f32.mrf.mxu0
    %1841 = vmatprep.mubr.f32.mxu0 0.0
    %1842 = vmatmul.mubr.f32.gmra.mxu0 %v1648
    %v1843 = vpop.f32.mrf.mxu0
    %v1844 = vadd.f32 0.0, %v1843
    %v1845 = vpop.f32.mrf.mxu0
    %1846 = vmatprep.mubr.f32.mxu0 0.0
    %1847 = vmatmul.mubr.f32.gmra.mxu0 %v1649
    %v1848 = vpop.f32.mrf.mxu0
    %v1849 = vadd.f32 0.0, %v1848
    %v1850 = vpop.f32.mrf.mxu0
    %1851 = vmatprep.mubr.f32.mxu0 0.0
    %1852 = vmatmul.mubr.f32.gmra.mxu0 %v1650
    %v1853 = vpop.f32.mrf.mxu0
    %v1854 = vadd.f32 0.0, %v1853
    %v1855 = vpop.f32.mrf.mxu0
    %1856 = vmatprep.mubr.f32.mxu0 0.0
    %1857 = vmatmul.mubr.f32.gmra.mxu0 %v1651
    %v1858 = vpop.f32.mrf.mxu0
    %v1859 = vadd.f32 0.0, %v1858
    %v1860 = vpop.f32.mrf.mxu0
    %1861 = vmatprep.mubr.f32.mxu0 0.0
    %1862 = vmatmul.mubr.f32.gmra.mxu0 %v1652
    %v1863 = vpop.f32.mrf.mxu0
    %v1864 = vadd.f32 0.0, %v1863
    %v1865 = vpop.f32.mrf.mxu0
    %1866 = vdwg.mxu0
    %1867 = vmatprep.subr.mxu0 0.0
    %1868 = vmatpush1.msra.mxu0 %v1745
    %1869 = vmatprep.subr.mxu0 0.0
    %1870 = vmatpush1.msra.mxu0 %v1744
    %1871 = vmatprep.subr.mxu0 0.0
    %1872 = vmatpush1.msra.mxu0 %v1743
    %1873 = vmatprep.subr.mxu0 0.0
    %1874 = vmatpush1.msra.mxu0 %v1742
    %1875 = vmatprep.subr.mxu0 0.0
    %1876 = vmatpush1.msra.mxu0 %v1741
    %1877 = vmatprep.subr.mxu0 0.0
    %1878 = vmatpush1.msra.mxu0 %v1740
    %1879 = vmatprep.subr.mxu0 0.0
    %1880 = vmatpush1.msra.mxu0 %v1739
    %1881 = vmatprep.subr.mxu0 0.0
    %1882 = vmatpush1.msra.mxu0 %v1738
    %1883 = vmatprep.subr.mxu0 0.0
    %1884 = vmatpush1.msra.mxu0 %v1737
    %1885 = vmatprep.subr.mxu0 0.0
    %1886 = vmatpush1.msra.mxu0 %v1736
    %1887 = vmatprep.subr.mxu0 0.0
    %1888 = vmatpush1.msra.mxu0 %v1735
    %1889 = vmatprep.subr.mxu0 0.0
    %1890 = vmatpush1.msra.mxu0 %v1734
    %1891 = vmatprep.subr.mxu0 0.0
    %1892 = vmatpush1.msra.mxu0 %v1733
    %1893 = vmatprep.subr.mxu0 0.0
    %1894 = vmatpush1.msra.mxu0 %v1732
    %1895 = vmatprep.subr.mxu0 0.0
    %1896 = vmatpush1.msra.mxu0 %v1731
    %1897 = vmatprep.subr.mxu0 0.0
    %1898 = vmatpush1.msra.mxu0 %v1730
    %1899 = vmatprep.subr.mxu0 0.0
    %1900 = vmatpush2.msra.mxu0 0.0
    %1901 = vmatprep.subr.mxu0 0.0
    %1902 = vmatpush2.msra.mxu0 0.0
    %1903 = vmatprep.subr.mxu0 0.0
    %1904 = vmatpush2.msra.mxu0 0.0
    %1905 = vmatprep.subr.mxu0 0.0
    %1906 = vmatpush2.msra.mxu0 0.0
    %1907 = vmatprep.subr.mxu0 0.0
    %1908 = vmatpush2.msra.mxu0 0.0
    %1909 = vmatprep.subr.mxu0 0.0
    %1910 = vmatpush2.msra.mxu0 0.0
    %1911 = vmatprep.subr.mxu0 0.0
    %1912 = vmatpush2.msra.mxu0 0.0
    %1913 = vmatprep.subr.mxu0 0.0
    %1914 = vmatpush2.msra.mxu0 0.0
    %1915 = vmatprep.subr.mxu0 0.0
    %1916 = vmatpush2.msra.mxu0 0.0
    %1917 = vmatprep.subr.mxu0 0.0
    %1918 = vmatpush2.msra.mxu0 0.0
    %1919 = vmatprep.subr.mxu0 0.0
    %1920 = vmatpush2.msra.mxu0 0.0
    %1921 = vmatprep.subr.mxu0 0.0
    %1922 = vmatpush2.msra.mxu0 0.0
    %1923 = vmatprep.subr.mxu0 0.0
    %1924 = vmatpush2.msra.mxu0 0.0
    %1925 = vmatprep.subr.mxu0 0.0
    %1926 = vmatpush2.msra.mxu0 0.0
    %1927 = vmatprep.subr.mxu0 0.0
    %1928 = vmatpush2.msra.mxu0 0.0
    %1929 = vmatprep.subr.mxu0 0.0
    %1930 = vmatpush2.msra.mxu0 0.0
    %1931 = vmatprep.mubr.f32.mxu0 0.0
    %1932 = vmatmul.mubr.f32.gmra.mxu0 %v1568
    %v1933 = vpop.f32.mrf.mxu0
    %v1934 = vadd.f32 %v1829, %v1933
    %v1935 = vpop.f32.mrf.mxu0
    %1936 = vmatprep.mubr.f32.mxu0 0.0
    %1937 = vmatmul.mubr.f32.gmra.mxu0 %v1569
    %v1938 = vpop.f32.mrf.mxu0
    %v1939 = vadd.f32 %v1834, %v1938
    %v1940 = vpop.f32.mrf.mxu0
    %1941 = vmatprep.mubr.f32.mxu0 0.0
    %1942 = vmatmul.mubr.f32.gmra.mxu0 %v1570
    %v1943 = vpop.f32.mrf.mxu0
    %v1944 = vadd.f32 %v1839, %v1943
    %v1945 = vpop.f32.mrf.mxu0
    %1946 = vmatprep.mubr.f32.mxu0 0.0
    %1947 = vmatmul.mubr.f32.gmra.mxu0 %v1571
    %v1948 = vpop.f32.mrf.mxu0
    %v1949 = vadd.f32 %v1844, %v1948
    %v1950 = vpop.f32.mrf.mxu0
    %1951 = vmatprep.mubr.f32.mxu0 0.0
    %1952 = vmatmul.mubr.f32.gmra.mxu0 %v1572
    %v1953 = vpop.f32.mrf.mxu0
    %v1954 = vadd.f32 %v1849, %v1953
    %v1955 = vpop.f32.mrf.mxu0
    %1956 = vmatprep.mubr.f32.mxu0 0.0
    %1957 = vmatmul.mubr.f32.gmra.mxu0 %v1573
    %v1958 = vpop.f32.mrf.mxu0
    %v1959 = vadd.f32 %v1854, %v1958
    %v1960 = vpop.f32.mrf.mxu0
    %1961 = vmatprep.mubr.f32.mxu0 0.0
    %1962 = vmatmul.mubr.f32.gmra.mxu0 %v1574
    %v1963 = vpop.f32.mrf.mxu0
    %v1964 = vadd.f32 %v1859, %v1963
    %v1965 = vpop.f32.mrf.mxu0
    %1966 = vmatprep.mubr.f32.mxu0 0.0
    %1967 = vmatmul.mubr.f32.gmra.mxu0 %v1575
    %v1968 = vpop.f32.mrf.mxu0
    %v1969 = vadd.f32 %v1864, %v1968
    %v1970 = vpop.f32.mrf.mxu0
    %1971 = vdwg.mxu0
    %v1972 = vld [vmem:[#allocation6 + $0x440] sm:$0xff]
    %v1973 = vld [vmem:[#allocation6 + $0x448] sm:$0xff]
    %v1974 = vld [vmem:[#allocation6 + $0x450] sm:$0xff]
    %v1975 = vld [vmem:[#allocation6 + $0x458] sm:$0xff]
    %v1976 = vld [vmem:[#allocation6 + $0x460] sm:$0xff]
    %v1977 = vld [vmem:[#allocation6 + $0x468] sm:$0xff]
    %v1978 = vld [vmem:[#allocation6 + $0x470] sm:$0xff]
    %v1979 = vld [vmem:[#allocation6 + $0x478] sm:$0xff]
    %v1980 = vld [vmem:[#allocation6 + $0x480] sm:$0xff]
    %v1981 = vld [vmem:[#allocation6 + $0x488] sm:$0xff]
    %v1982 = vld [vmem:[#allocation6 + $0x490] sm:$0xff]
    %v1983 = vld [vmem:[#allocation6 + $0x498] sm:$0xff]
    %v1984 = vld [vmem:[#allocation6 + $0x4a0] sm:$0xff]
    %v1985 = vld [vmem:[#allocation6 + $0x4a8] sm:$0xff]
    %v1986 = vld [vmem:[#allocation6 + $0x4b0] sm:$0xff]
    %v1987 = vld [vmem:[#allocation6 + $0x4b8] sm:$0xff]
    %1988 = vmatprep.subr.mxu0 0.0
    %1989 = vmatpush1.msra.mxu0 %v1987
    %1990 = vmatprep.subr.mxu0 0.0
    %1991 = vmatpush1.msra.mxu0 %v1986
    %1992 = vmatprep.subr.mxu0 0.0
    %1993 = vmatpush1.msra.mxu0 %v1985
    %1994 = vmatprep.subr.mxu0 0.0
    %1995 = vmatpush1.msra.mxu0 %v1984
    %1996 = vmatprep.subr.mxu0 0.0
    %1997 = vmatpush1.msra.mxu0 %v1983
    %1998 = vmatprep.subr.mxu0 0.0
    %1999 = vmatpush1.msra.mxu0 %v1982
    %2000 = vmatprep.subr.mxu0 0.0
    %2001 = vmatpush1.msra.mxu0 %v1981
    %2002 = vmatprep.subr.mxu0 0.0
    %2003 = vmatpush1.msra.mxu0 %v1980
    %2004 = vmatprep.subr.mxu0 0.0
    %2005 = vmatpush1.msra.mxu0 %v1979
    %2006 = vmatprep.subr.mxu0 0.0
    %2007 = vmatpush1.msra.mxu0 %v1978
    %2008 = vmatprep.subr.mxu0 0.0
    %2009 = vmatpush1.msra.mxu0 %v1977
    %2010 = vmatprep.subr.mxu0 0.0
    %2011 = vmatpush1.msra.mxu0 %v1976
    %2012 = vmatprep.subr.mxu0 0.0
    %2013 = vmatpush1.msra.mxu0 %v1975
    %2014 = vmatprep.subr.mxu0 0.0
    %2015 = vmatpush1.msra.mxu0 %v1974
    %2016 = vmatprep.subr.mxu0 0.0
    %2017 = vmatpush1.msra.mxu0 %v1973
    %2018 = vmatprep.subr.mxu0 0.0
    %2019 = vmatpush1.msra.mxu0 %v1972
    %2020 = vmatprep.subr.mxu0 0.0
    %2021 = vmatpush2.msra.mxu0 0.0
    %2022 = vmatprep.subr.mxu0 0.0
    %2023 = vmatpush2.msra.mxu0 0.0
    %2024 = vmatprep.subr.mxu0 0.0
    %2025 = vmatpush2.msra.mxu0 0.0
    %2026 = vmatprep.subr.mxu0 0.0
    %2027 = vmatpush2.msra.mxu0 0.0
    %2028 = vmatprep.subr.mxu0 0.0
    %2029 = vmatpush2.msra.mxu0 0.0
    %2030 = vmatprep.subr.mxu0 0.0
    %2031 = vmatpush2.msra.mxu0 0.0
    %2032 = vmatprep.subr.mxu0 0.0
    %2033 = vmatpush2.msra.mxu0 0.0
    %2034 = vmatprep.subr.mxu0 0.0
    %2035 = vmatpush2.msra.mxu0 0.0
    %2036 = vmatprep.subr.mxu0 0.0
    %2037 = vmatpush2.msra.mxu0 0.0
    %2038 = vmatprep.subr.mxu0 0.0
    %2039 = vmatpush2.msra.mxu0 0.0
    %2040 = vmatprep.subr.mxu0 0.0
    %2041 = vmatpush2.msra.mxu0 0.0
    %2042 = vmatprep.subr.mxu0 0.0
    %2043 = vmatpush2.msra.mxu0 0.0
    %2044 = vmatprep.subr.mxu0 0.0
    %2045 = vmatpush2.msra.mxu0 0.0
    %2046 = vmatprep.subr.mxu0 0.0
    %2047 = vmatpush2.msra.mxu0 0.0
    %2048 = vmatprep.subr.mxu0 0.0
    %2049 = vmatpush2.msra.mxu0 0.0
    %2050 = vmatprep.subr.mxu0 0.0
    %2051 = vmatpush2.msra.mxu0 0.0
    %2052 = vmatprep.mubr.f32.mxu0 0.0
    %2053 = vmatmul.mubr.f32.gmra.mxu0 %v1722
    %v2054 = vpop.f32.mrf.mxu0
    %v2055 = vadd.f32 0.0, %v2054
    %v2056 = vpop.f32.mrf.mxu0
    %2057 = vmatprep.mubr.f32.mxu0 0.0
    %2058 = vmatmul.mubr.f32.gmra.mxu0 %v1723
    %v2059 = vpop.f32.mrf.mxu0
    %v2060 = vadd.f32 0.0, %v2059
    %v2061 = vpop.f32.mrf.mxu0
    %2062 = vmatprep.mubr.f32.mxu0 0.0
    %2063 = vmatmul.mubr.f32.gmra.mxu0 %v1724
    %v2064 = vpop.f32.mrf.mxu0
    %v2065 = vadd.f32 0.0, %v2064
    %v2066 = vpop.f32.mrf.mxu0
    %2067 = vmatprep.mubr.f32.mxu0 0.0
    %2068 = vmatmul.mubr.f32.gmra.mxu0 %v1725
    %v2069 = vpop.f32.mrf.mxu0
    %v2070 = vadd.f32 0.0, %v2069
    %v2071 = vpop.f32.mrf.mxu0
    %2072 = vmatprep.mubr.f32.mxu0 0.0
    %2073 = vmatmul.mubr.f32.gmra.mxu0 %v1726
    %v2074 = vpop.f32.mrf.mxu0
    %v2075 = vadd.f32 0.0, %v2074
    %v2076 = vpop.f32.mrf.mxu0
    %2077 = vmatprep.mubr.f32.mxu0 0.0
    %2078 = vmatmul.mubr.f32.gmra.mxu0 %v1727
    %v2079 = vpop.f32.mrf.mxu0
    %v2080 = vadd.f32 0.0, %v2079
    %v2081 = vpop.f32.mrf.mxu0
    %2082 = vmatprep.mubr.f32.mxu0 0.0
    %2083 = vmatmul.mubr.f32.gmra.mxu0 %v1728
    %v2084 = vpop.f32.mrf.mxu0
    %v2085 = vadd.f32 0.0, %v2084
    %v2086 = vpop.f32.mrf.mxu0
    %2087 = vmatprep.mubr.f32.mxu0 0.0
    %2088 = vmatmul.mubr.f32.gmra.mxu0 %v1729
    %v2089 = vpop.f32.mrf.mxu0
    %v2090 = vadd.f32 0.0, %v2089
    %v2091 = vpop.f32.mrf.mxu0
    %2092 = vdwg.mxu0
    %v2093 = vadd.f32 %v1934, %v2055
    %v2094 = vadd.f32 %v1939, %v2060
    %v2095 = vadd.f32 %v1944, %v2065
    %v2096 = vadd.f32 %v1949, %v2070
    %v2097 = vadd.f32 %v1954, %v2075
    %v2098 = vadd.f32 %v1959, %v2080
    %v2099 = vadd.f32 %v1964, %v2085
    %v2100 = vadd.f32 %v1969, %v2090
    %v2101 = vld [vmem:[#allocation4 + $0x13] sm:$0x1]
    %v2103 = vlaneseq
    %v2104 = vshrl.u32 %v2103, 7
    %v2105 = vsub.s32 0, %v2104
    %v2106 = vrot.slane %v2101, %v2105
    %v2108 = vadd.f32 %v2093, %v2106
    %v2109 = vadd.f32 %v2094, %v2106
    %v2110 = vadd.f32 %v2095, %v2106
    %v2111 = vadd.f32 %v2096, %v2106
    %v2112 = vadd.f32 %v2097, %v2106
    %v2113 = vadd.f32 %v2098, %v2106
    %v2114 = vadd.f32 %v2099, %v2106
    %v2115 = vadd.f32 %v2100, %v2106
    %v2116 = vmax.f32 %v2108, 0.0
    %v2117 = vmax.f32 %v2109, 0.0
    %v2118 = vmax.f32 %v2110, 0.0
    %v2119 = vmax.f32 %v2111, 0.0
    %v2120 = vmax.f32 %v2112, 0.0
    %v2121 = vmax.f32 %v2113, 0.0
    %v2122 = vmax.f32 %v2114, 0.0
    %v2123 = vmax.f32 %v2115, 0.0
    %v2124 = vld [vmem:[#allocation6 + $0x4c0] sm:$0xff]
    %v2125 = vld [vmem:[#allocation6 + $0x4c8] sm:$0xff]
    %v2126 = vld [vmem:[#allocation6 + $0x4d0] sm:$0xff]
    %v2127 = vld [vmem:[#allocation6 + $0x4d8] sm:$0xff]
    %v2128 = vld [vmem:[#allocation6 + $0x4e0] sm:$0xff]
    %v2129 = vld [vmem:[#allocation6 + $0x4e8] sm:$0xff]
    %v2130 = vld [vmem:[#allocation6 + $0x4f0] sm:$0xff]
    %v2131 = vld [vmem:[#allocation6 + $0x4f8] sm:$0xff]
    %v2132 = vld [vmem:[#allocation6 + $0x500] sm:$0xff]
    %v2133 = vld [vmem:[#allocation6 + $0x508] sm:$0xff]
    %v2134 = vld [vmem:[#allocation6 + $0x510] sm:$0xff]
    %v2135 = vld [vmem:[#allocation6 + $0x518] sm:$0xff]
    %v2136 = vld [vmem:[#allocation6 + $0x520] sm:$0xff]
    %v2137 = vld [vmem:[#allocation6 + $0x528] sm:$0xff]
    %v2138 = vld [vmem:[#allocation6 + $0x530] sm:$0xff]
    %v2139 = vld [vmem:[#allocation6 + $0x538] sm:$0xff]
    %v2140 = vld [vmem:[#allocation4 + $0x14] sm:$0x1]
    %v2142 = vlaneseq
    %v2143 = vshrl.u32 %v2142, 7
    %v2144 = vsub.s32 0, %v2143
    %v2145 = vrot.slane %v2140, %v2144
    %2147 = vmatprep.subr.mxu0 0.0
    %2148 = vmatpush1.msra.mxu0 %v2139
    %2149 = vmatprep.subr.mxu0 0.0
    %2150 = vmatpush1.msra.mxu0 %v2138
    %2151 = vmatprep.subr.mxu0 0.0
    %2152 = vmatpush1.msra.mxu0 %v2137
    %2153 = vmatprep.subr.mxu0 0.0
    %2154 = vmatpush1.msra.mxu0 %v2136
    %2155 = vmatprep.subr.mxu0 0.0
    %2156 = vmatpush1.msra.mxu0 %v2135
    %2157 = vmatprep.subr.mxu0 0.0
    %2158 = vmatpush1.msra.mxu0 %v2134
    %2159 = vmatprep.subr.mxu0 0.0
    %2160 = vmatpush1.msra.mxu0 %v2133
    %2161 = vmatprep.subr.mxu0 0.0
    %2162 = vmatpush1.msra.mxu0 %v2132
    %2163 = vmatprep.subr.mxu0 0.0
    %2164 = vmatpush1.msra.mxu0 %v2131
    %2165 = vmatprep.subr.mxu0 0.0
    %2166 = vmatpush1.msra.mxu0 %v2130
    %2167 = vmatprep.subr.mxu0 0.0
    %2168 = vmatpush1.msra.mxu0 %v2129
    %2169 = vmatprep.subr.mxu0 0.0
    %2170 = vmatpush1.msra.mxu0 %v2128
    %2171 = vmatprep.subr.mxu0 0.0
    %2172 = vmatpush1.msra.mxu0 %v2127
    %2173 = vmatprep.subr.mxu0 0.0
    %2174 = vmatpush1.msra.mxu0 %v2126
    %2175 = vmatprep.subr.mxu0 0.0
    %2176 = vmatpush1.msra.mxu0 %v2125
    %2177 = vmatprep.subr.mxu0 0.0
    %2178 = vmatpush1.msra.mxu0 %v2124
    %2179 = vmatprep.subr.mxu0 0.0
    %2180 = vmatpush2.msra.mxu0 0.0
    %2181 = vmatprep.subr.mxu0 0.0
    %2182 = vmatpush2.msra.mxu0 0.0
    %2183 = vmatprep.subr.mxu0 0.0
    %2184 = vmatpush2.msra.mxu0 0.0
    %2185 = vmatprep.subr.mxu0 0.0
    %2186 = vmatpush2.msra.mxu0 0.0
    %2187 = vmatprep.subr.mxu0 0.0
    %2188 = vmatpush2.msra.mxu0 0.0
    %2189 = vmatprep.subr.mxu0 0.0
    %2190 = vmatpush2.msra.mxu0 0.0
    %2191 = vmatprep.subr.mxu0 0.0
    %2192 = vmatpush2.msra.mxu0 0.0
    %2193 = vmatprep.subr.mxu0 0.0
    %2194 = vmatpush2.msra.mxu0 0.0
    %2195 = vmatprep.subr.mxu0 0.0
    %2196 = vmatpush2.msra.mxu0 0.0
    %2197 = vmatprep.subr.mxu0 0.0
    %2198 = vmatpush2.msra.mxu0 0.0
    %2199 = vmatprep.subr.mxu0 0.0
    %2200 = vmatpush2.msra.mxu0 0.0
    %2201 = vmatprep.subr.mxu0 0.0
    %2202 = vmatpush2.msra.mxu0 0.0
    %2203 = vmatprep.subr.mxu0 0.0
    %2204 = vmatpush2.msra.mxu0 0.0
    %2205 = vmatprep.subr.mxu0 0.0
    %2206 = vmatpush2.msra.mxu0 0.0
    %2207 = vmatprep.subr.mxu0 0.0
    %2208 = vmatpush2.msra.mxu0 0.0
    %2209 = vmatprep.subr.mxu0 0.0
    %2210 = vmatpush2.msra.mxu0 0.0
    %2211 = vmatprep.mubr.f32.mxu0 0.0
    %2212 = vmatmul.mubr.f32.gmra.mxu0 %v2116
    %v2213 = vpop.f32.mrf.mxu0
    %v2214 = vadd.f32 %v2145, %v2213
    %v2215 = vpop.f32.mrf.mxu0
    %2216 = vmatprep.mubr.f32.mxu0 0.0
    %2217 = vmatmul.mubr.f32.gmra.mxu0 %v2117
    %v2218 = vpop.f32.mrf.mxu0
    %v2219 = vadd.f32 %v2145, %v2218
    %v2220 = vpop.f32.mrf.mxu0
    %2221 = vmatprep.mubr.f32.mxu0 0.0
    %2222 = vmatmul.mubr.f32.gmra.mxu0 %v2118
    %v2223 = vpop.f32.mrf.mxu0
    %v2224 = vadd.f32 %v2145, %v2223
    %v2225 = vpop.f32.mrf.mxu0
    %2226 = vmatprep.mubr.f32.mxu0 0.0
    %2227 = vmatmul.mubr.f32.gmra.mxu0 %v2119
    %v2228 = vpop.f32.mrf.mxu0
    %v2229 = vadd.f32 %v2145, %v2228
    %v2230 = vpop.f32.mrf.mxu0
    %2231 = vmatprep.mubr.f32.mxu0 0.0
    %2232 = vmatmul.mubr.f32.gmra.mxu0 %v2120
    %v2233 = vpop.f32.mrf.mxu0
    %v2234 = vadd.f32 %v2145, %v2233
    %v2235 = vpop.f32.mrf.mxu0
    %2236 = vmatprep.mubr.f32.mxu0 0.0
    %2237 = vmatmul.mubr.f32.gmra.mxu0 %v2121
    %v2238 = vpop.f32.mrf.mxu0
    %v2239 = vadd.f32 %v2145, %v2238
    %v2240 = vpop.f32.mrf.mxu0
    %2241 = vmatprep.mubr.f32.mxu0 0.0
    %2242 = vmatmul.mubr.f32.gmra.mxu0 %v2122
    %v2243 = vpop.f32.mrf.mxu0
    %v2244 = vadd.f32 %v2145, %v2243
    %v2245 = vpop.f32.mrf.mxu0
    %2246 = vmatprep.mubr.f32.mxu0 0.0
    %2247 = vmatmul.mubr.f32.gmra.mxu0 %v2123
    %v2248 = vpop.f32.mrf.mxu0
    %v2249 = vadd.f32 %v2145, %v2248
    %v2250 = vpop.f32.mrf.mxu0
    %2251 = vdwg.mxu0
    %v2252 = vld [vmem:[#allocation6 + $0x540] sm:$0xff]
    %v2253 = vld [vmem:[#allocation6 + $0x548] sm:$0xff]
    %v2254 = vld [vmem:[#allocation6 + $0x550] sm:$0xff]
    %v2255 = vld [vmem:[#allocation6 + $0x558] sm:$0xff]
    %v2256 = vld [vmem:[#allocation6 + $0x560] sm:$0xff]
    %v2257 = vld [vmem:[#allocation6 + $0x568] sm:$0xff]
    %v2258 = vld [vmem:[#allocation6 + $0x570] sm:$0xff]
    %v2259 = vld [vmem:[#allocation6 + $0x578] sm:$0xff]
    %v2260 = vld [vmem:[#allocation6 + $0x580] sm:$0xff]
    %v2261 = vld [vmem:[#allocation6 + $0x588] sm:$0xff]
    %v2262 = vld [vmem:[#allocation6 + $0x590] sm:$0xff]
    %v2263 = vld [vmem:[#allocation6 + $0x598] sm:$0xff]
    %v2264 = vld [vmem:[#allocation6 + $0x5a0] sm:$0xff]
    %v2265 = vld [vmem:[#allocation6 + $0x5a8] sm:$0xff]
    %v2266 = vld [vmem:[#allocation6 + $0x5b0] sm:$0xff]
    %v2267 = vld [vmem:[#allocation6 + $0x5b8] sm:$0xff]
    %v2268 = vld [vmem:[#allocation4 + $0x15] sm:$0x1]
    %v2270 = vlaneseq
    %v2271 = vshrl.u32 %v2270, 7
    %v2272 = vsub.s32 0, %v2271
    %v2273 = vrot.slane %v2268, %v2272
    %2275 = vmatprep.subr.mxu0 0.0
    %2276 = vmatpush1.msra.mxu0 %v2267
    %2277 = vmatprep.subr.mxu0 0.0
    %2278 = vmatpush1.msra.mxu0 %v2266
    %2279 = vmatprep.subr.mxu0 0.0
    %2280 = vmatpush1.msra.mxu0 %v2265
    %2281 = vmatprep.subr.mxu0 0.0
    %2282 = vmatpush1.msra.mxu0 %v2264
    %2283 = vmatprep.subr.mxu0 0.0
    %2284 = vmatpush1.msra.mxu0 %v2263
    %2285 = vmatprep.subr.mxu0 0.0
    %2286 = vmatpush1.msra.mxu0 %v2262
    %2287 = vmatprep.subr.mxu0 0.0
    %2288 = vmatpush1.msra.mxu0 %v2261
    %2289 = vmatprep.subr.mxu0 0.0
    %2290 = vmatpush1.msra.mxu0 %v2260
    %2291 = vmatprep.subr.mxu0 0.0
    %2292 = vmatpush1.msra.mxu0 %v2259
    %2293 = vmatprep.subr.mxu0 0.0
    %2294 = vmatpush1.msra.mxu0 %v2258
    %2295 = vmatprep.subr.mxu0 0.0
    %2296 = vmatpush1.msra.mxu0 %v2257
    %2297 = vmatprep.subr.mxu0 0.0
    %2298 = vmatpush1.msra.mxu0 %v2256
    %2299 = vmatprep.subr.mxu0 0.0
    %2300 = vmatpush1.msra.mxu0 %v2255
    %2301 = vmatprep.subr.mxu0 0.0
    %2302 = vmatpush1.msra.mxu0 %v2254
    %2303 = vmatprep.subr.mxu0 0.0
    %2304 = vmatpush1.msra.mxu0 %v2253
    %2305 = vmatprep.subr.mxu0 0.0
    %2306 = vmatpush1.msra.mxu0 %v2252
    %2307 = vmatprep.subr.mxu0 0.0
    %2308 = vmatpush2.msra.mxu0 0.0
    %2309 = vmatprep.subr.mxu0 0.0
    %2310 = vmatpush2.msra.mxu0 0.0
    %2311 = vmatprep.subr.mxu0 0.0
    %2312 = vmatpush2.msra.mxu0 0.0
    %2313 = vmatprep.subr.mxu0 0.0
    %2314 = vmatpush2.msra.mxu0 0.0
    %2315 = vmatprep.subr.mxu0 0.0
    %2316 = vmatpush2.msra.mxu0 0.0
    %2317 = vmatprep.subr.mxu0 0.0
    %2318 = vmatpush2.msra.mxu0 0.0
    %2319 = vmatprep.subr.mxu0 0.0
    %2320 = vmatpush2.msra.mxu0 0.0
    %2321 = vmatprep.subr.mxu0 0.0
    %2322 = vmatpush2.msra.mxu0 0.0
    %2323 = vmatprep.subr.mxu0 0.0
    %2324 = vmatpush2.msra.mxu0 0.0
    %2325 = vmatprep.subr.mxu0 0.0
    %2326 = vmatpush2.msra.mxu0 0.0
    %2327 = vmatprep.subr.mxu0 0.0
    %2328 = vmatpush2.msra.mxu0 0.0
    %2329 = vmatprep.subr.mxu0 0.0
    %2330 = vmatpush2.msra.mxu0 0.0
    %2331 = vmatprep.subr.mxu0 0.0
    %2332 = vmatpush2.msra.mxu0 0.0
    %2333 = vmatprep.subr.mxu0 0.0
    %2334 = vmatpush2.msra.mxu0 0.0
    %2335 = vmatprep.subr.mxu0 0.0
    %2336 = vmatpush2.msra.mxu0 0.0
    %2337 = vmatprep.subr.mxu0 0.0
    %2338 = vmatpush2.msra.mxu0 0.0
    %2339 = vmatprep.mubr.f32.mxu0 0.0
    %2340 = vmatmul.mubr.f32.gmra.mxu0 %v2214
    %v2341 = vpop.f32.mrf.mxu0
    %v2342 = vadd.f32 %v2273, %v2341
    %v2343 = vpop.f32.mrf.mxu0
    %2344 = vmatprep.mubr.f32.mxu0 0.0
    %2345 = vmatmul.mubr.f32.gmra.mxu0 %v2219
    %v2346 = vpop.f32.mrf.mxu0
    %v2347 = vadd.f32 %v2273, %v2346
    %v2348 = vpop.f32.mrf.mxu0
    %2349 = vmatprep.mubr.f32.mxu0 0.0
    %2350 = vmatmul.mubr.f32.gmra.mxu0 %v2224
    %v2351 = vpop.f32.mrf.mxu0
    %v2352 = vadd.f32 %v2273, %v2351
    %v2353 = vpop.f32.mrf.mxu0
    %2354 = vmatprep.mubr.f32.mxu0 0.0
    %2355 = vmatmul.mubr.f32.gmra.mxu0 %v2229
    %v2356 = vpop.f32.mrf.mxu0
    %v2357 = vadd.f32 %v2273, %v2356
    %v2358 = vpop.f32.mrf.mxu0
    %2359 = vmatprep.mubr.f32.mxu0 0.0
    %2360 = vmatmul.mubr.f32.gmra.mxu0 %v2234
    %v2361 = vpop.f32.mrf.mxu0
    %v2362 = vadd.f32 %v2273, %v2361
    %v2363 = vpop.f32.mrf.mxu0
    %2364 = vmatprep.mubr.f32.mxu0 0.0
    %2365 = vmatmul.mubr.f32.gmra.mxu0 %v2239
    %v2366 = vpop.f32.mrf.mxu0
    %v2367 = vadd.f32 %v2273, %v2366
    %v2368 = vpop.f32.mrf.mxu0
    %2369 = vmatprep.mubr.f32.mxu0 0.0
    %2370 = vmatmul.mubr.f32.gmra.mxu0 %v2244
    %v2371 = vpop.f32.mrf.mxu0
    %v2372 = vadd.f32 %v2273, %v2371
    %v2373 = vpop.f32.mrf.mxu0
    %2374 = vmatprep.mubr.f32.mxu0 0.0
    %2375 = vmatmul.mubr.f32.gmra.mxu0 %v2249
    %v2376 = vpop.f32.mrf.mxu0
    %v2377 = vadd.f32 %v2273, %v2376
    %v2378 = vpop.f32.mrf.mxu0
    %2379 = vdwg.mxu0
    %2380 = vst [vmem:[%s5] sm:$0xff] %v2342
    %2381 = vst [vmem:[%s5 + $0x8] sm:$0xff] %v2347
    %2382 = vst [vmem:[%s5 + $0x10] sm:$0xff] %v2352
    %2383 = vst [vmem:[%s5 + $0x18] sm:$0xff] %v2357
    %2384 = vst [vmem:[%s5 + $0x20] sm:$0xff] %v2362
    %2385 = vst [vmem:[%s5 + $0x28] sm:$0xff] %v2367
    %2386 = vst [vmem:[%s5 + $0x30] sm:$0xff] %v2372
    %2387 = vst [vmem:[%s5 + $0x38] sm:$0xff] %v2377
    // Predicated region
    $region34: #{forward.1} parent=1 // pred_check
      _
    $region35: #{forward.1} parent=1 // pred_check_branch
      %2389 = sbr.rel (0) target = $region37
    $region36: #{forward.1} parent=1 // pred_region
      _
    $region37: #{forward.1} parent=1 // pred_fallthru
      _
    // Predicated region
    $region38: #{forward.1} parent=1 // pred_check
      _
    $region39: #{forward.1} parent=1 // pred_check_branch
      %2391 = sbr.rel (0) target = $region41
    $region40: #{forward.1} parent=1 // pred_region
      _
    $region41: #{forward.1} parent=1 // pred_fallthru
      _
    %2392 = vsyncpa [#allocation3], 1
    %2393 = vsyncpa [#allocation5], 1

</llo_original>
